<compile_context>
chip_gen: v5e
topology: v5e:2x2
jax: 0.10.0
libtpu: 0.0.40
codegen_flags: <defaults>
</compile_context>

<pallas_src>
import math

import jax
import jax.numpy as jnp
from jax.experimental import pallas as pl
from jax.experimental.pallas import tpu as pltpu

BN_EPS = 1e-5


def _residual_gcn_kernel(x_ref, adj_ref, w1_ref, w2_ref, gamma_ref, beta_ref,
                         out_ref):
    """One graph per grid step: out = relu(bn(A @ (relu(bn(A @ (x@W1))) @ W2)) + x)."""
    x = x_ref[...]                                   # (N, F)  f32
    adj = adj_ref[...].astype(jnp.bfloat16)          # (N, N)  bf16, reused twice
    gamma = gamma_ref[...]                           # (1, F)
    beta = beta_ref[...]                             # (1, F)
    inv_n = 1.0 / x.shape[0]

    def bn(h):
        # Training-mode BatchNorm1d folded to per-feature scale/shift (biased
        # batch variance).  The conv bias that precedes BN is omitted on
        # purpose: a per-feature constant is cancelled exactly by the batch
        # mean subtraction.
        mean = jnp.sum(h, axis=0, keepdims=True) * inv_n
        hc = h - mean
        var = jnp.sum(hc * hc, axis=0, keepdims=True) * inv_n
        return hc * (gamma * jax.lax.rsqrt(var + BN_EPS)) + beta

    # ---- GCN 1:  H1 = adj @ (x @ W1) ---------------------------------------
    s1 = jnp.dot(x.astype(jnp.bfloat16), w1_ref[...],
                 preferred_element_type=jnp.float32).astype(jnp.bfloat16)
    h1 = jnp.dot(adj, s1, preferred_element_type=jnp.float32)
    g = jnp.maximum(bn(h1), 0.0)

    # ---- GCN 2:  H2 = adj @ (relu(bn(H1)) @ W2) ----------------------------
    s2 = jnp.dot(g.astype(jnp.bfloat16), w2_ref[...],
                 preferred_element_type=jnp.float32).astype(jnp.bfloat16)
    h2 = jnp.dot(adj, s2, preferred_element_type=jnp.float32)

    # ---- BN + residual + relu, lane-dense (N, F) store ----------------------
    out_ref[...] = jnp.maximum(bn(h2) + x, 0.0)


def residual_gcn_forward(x, adj, w1, w2, gamma, beta):
    """x: [B, N, F] f32, adj: [B, N, N] f32, weights [F, F], gamma/beta [F].

    Each graph in the batch is an independent forward pass of the module
    (its own BatchNorm batch statistics).
    """
    B, N, F = x.shape
    assert adj.shape == (B, N, N)
    assert F % 128 == 0, "feature dim must be lane-dense (multiple of 128)"
    assert N % 8 == 0, "node dim must be a multiple of the sublane count (8)"

    # Rough VMEM budget: double-buffered x/adj/out blocks + weights + body temps.
    vmem_est = (2 * (N * F * 4 + N * N * 4 + N * F * 4)      # pipelined blocks
                + 4 * F * F * 2                              # W1/W2 bf16 (x2 buf)
                + N * N * 2 + 6 * N * F * 4)                 # in-body temporaries
    assert vmem_est < 16 * 1024 * 1024, (
        "graph too large for the fully-resident kernel (see TODO above)")

    w1_b = w1.astype(jnp.bfloat16)
    w2_b = w2.astype(jnp.bfloat16)
    gamma2 = gamma.reshape(1, F).astype(jnp.float32)
    beta2 = beta.reshape(1, F).astype(jnp.float32)

    grid_spec = pltpu.PrefetchScalarGridSpec(
        num_scalar_prefetch=0,
        grid=(B,),
        in_specs=[
            pl.BlockSpec((None, N, F), lambda b: (b, 0, 0)),   # x  (f32)
            pl.BlockSpec((None, N, N), lambda b: (b, 0, 0)),   # adj (f32, read once)
            pl.BlockSpec((F, F), lambda b: (0, 0)),            # W1 (bf16)
            pl.BlockSpec((F, F), lambda b: (0, 0)),            # W2 (bf16)
            pl.BlockSpec((1, F), lambda b: (0, 0)),            # gamma
            pl.BlockSpec((1, F), lambda b: (0, 0)),            # beta
        ],
        out_specs=pl.BlockSpec((None, N, F), lambda b: (b, 0, 0)),
    )

    return pl.pallas_call(
        _residual_gcn_kernel,
        out_shape=jax.ShapeDtypeStruct((B, N, F), jnp.float32),
        grid_spec=grid_spec,
        compiler_params=pltpu.CompilerParams(
            dimension_semantics=("parallel",)),
    )(x, adj, w1_b, w2_b, gamma2, beta2)


def init_params(key, in_features, out_features):
    """Deterministic init matching GraphConvolutionLayer.reset_parameters."""
    stdv = 1.0 / math.sqrt(out_features)
    k1, k2, k3, k4 = jax.random.split(key, 4)
    w1 = jax.random.uniform(k1, (in_features, out_features), jnp.float32, -stdv, stdv)
    b1 = jax.random.uniform(k2, (out_features,), jnp.float32, -stdv, stdv)
    w2 = jax.random.uniform(k3, (in_features, out_features), jnp.float32, -stdv, stdv)
    b2 = jax.random.uniform(k4, (out_features,), jnp.float32, -stdv, stdv)
    gamma = jnp.ones((out_features,), jnp.float32)    # BatchNorm1d weight init
    beta = jnp.zeros((out_features,), jnp.float32)    # BatchNorm1d bias init
    return w1, b1, w2, b2, gamma, beta


def _reference_f32(x, adj, w1, b1, w2, b2, gamma, beta):
    """Module-faithful per-graph forward (f32 everywhere, biases included)."""
    g = gamma.reshape(1, -1)
    bt = beta.reshape(1, -1)

    def gcn(inp, w, bias):
        return adj @ (inp @ w) + bias

    def bn(h):
        mean = jnp.mean(h, axis=0, keepdims=True)
        var = jnp.mean((h - mean) ** 2, axis=0, keepdims=True)
        return (h - mean) * jax.lax.rsqrt(var + BN_EPS) * g + bt

    h = jnp.maximum(bn(gcn(x, w1, b1)), 0.0)
    h = bn(gcn(h, w2, b2)) + x
    return jnp.maximum(h, 0.0)


def _reference_matched(x, adj, w1, w2, gamma, beta):
    """Per-graph forward mirroring the kernel's precision choices
    (bf16 MXU operands, f32 accumulation & statistics, biases folded out)."""
    g = gamma.reshape(1, -1)
    bt = beta.reshape(1, -1)
    adj_b = adj.astype(jnp.bfloat16)

    def bn(h):
        mean = jnp.mean(h, axis=0, keepdims=True)
        hc = h - mean
        var = jnp.mean(hc * hc, axis=0, keepdims=True)
        return hc * (g * jax.lax.rsqrt(var + BN_EPS)) + bt

    s1 = jnp.dot(x.astype(jnp.bfloat16), w1.astype(jnp.bfloat16),
                 preferred_element_type=jnp.float32).astype(jnp.bfloat16)
    h1 = jnp.dot(adj_b, s1, preferred_element_type=jnp.float32)
    gact = jnp.maximum(bn(h1), 0.0)
    s2 = jnp.dot(gact.astype(jnp.bfloat16), w2.astype(jnp.bfloat16),
                 preferred_element_type=jnp.float32).astype(jnp.bfloat16)
    h2 = jnp.dot(adj_b, s2, preferred_element_type=jnp.float32)
    return jnp.maximum(bn(h2) + x, 0.0)


if __name__ == "__main__":
    B = 2         # independent graphs (parallel grid axis; per-graph BN stats)
    N = 256       # nodes per graph
    FEATS = 128   # in_features == out_features (lane-dense, required by residual)

    key = jax.random.PRNGKey(0)
    kx, kadj, kparams = jax.random.split(key, 3)

    x = jax.random.normal(kx, (B, N, FEATS), dtype=jnp.float32)
    adj = jax.random.uniform(kadj, (B, N, N), dtype=jnp.float32)   # dense (soft) adjacency

    w1, b1, w2, b2, gamma, beta = init_params(kparams, FEATS, FEATS)

    out = residual_gcn_forward(x, adj, w1, w2, gamma, beta)
    out = jax.block_until_ready(out)
    assert out.shape == (B, N, FEATS)

    # Tight check against a reference using the kernel's exact precision choices.
    ref_matched = jax.vmap(
        _reference_matched, in_axes=(0, 0, None, None, None, None)
    )(x, adj, w1, w2, gamma, beta)
    assert jnp.allclose(out, ref_matched, atol=5e-3, rtol=5e-3), (
        "matched-ref mismatch, max |diff| = %f"
        % float(jnp.max(jnp.abs(out - ref_matched))))

    # Loose check against the module-faithful f32 forward (biases included);
    # differences come only from the bf16 MXU operands.
    ref_f32 = jax.vmap(
        _reference_f32, in_axes=(0, 0, None, None, None, None, None, None)
    )(x, adj, w1, b1, w2, b2, gamma, beta)
    assert jnp.allclose(out, ref_f32, atol=1e-1, rtol=1e-1), (
        "f32-ref mismatch, max |diff| = %f"
        % float(jnp.max(jnp.abs(out - ref_f32))))

    print("KERNEL_OK")
</pallas_src>

<mosaic_0001>
module attributes {stable_mosaic.version = 11 : i64} {
  func.func @_residual_gcn_kernel(%arg0: i32, %arg1: memref<1x256x128xf32, #tpu.memory_space<vmem>>, %arg2: memref<1x256x256xf32, #tpu.memory_space<vmem>>, %arg3: memref<128x128xbf16, #tpu.memory_space<vmem>>, %arg4: memref<128x128xbf16, #tpu.memory_space<vmem>>, %arg5: memref<1x128xf32, #tpu.memory_space<vmem>>, %arg6: memref<1x128xf32, #tpu.memory_space<vmem>>, %arg7: memref<1x256x128xf32, #tpu.memory_space<vmem>>) attributes {dimension_semantics = [#tpu.dimension_semantics<parallel>], iteration_bounds = array<i64: 2>, scalar_prefetch = 0 : i64, scratch_operands = 0 : i64, tpu.core_type = #tpu.core_type<tc>, window_params = [{transform_indices = @transform_0, window_bounds = array<i64: 1, 256, 128>}, {transform_indices = @transform_1, window_bounds = array<i64: 1, 256, 256>}, {pipeline_mode = #tpu.pipeline_mode<synchronous>, transform_indices = @transform_2, window_bounds = array<i64: 128, 128>}, {pipeline_mode = #tpu.pipeline_mode<synchronous>, transform_indices = @transform_3, window_bounds = array<i64: 128, 128>}, {pipeline_mode = #tpu.pipeline_mode<synchronous>, transform_indices = @transform_4, window_bounds = array<i64: 1, 128>}, {pipeline_mode = #tpu.pipeline_mode<synchronous>, transform_indices = @transform_5, window_bounds = array<i64: 1, 128>}, {transform_indices = @transform_6, window_bounds = array<i64: 1, 256, 128>}]} {
    %c0 = arith.constant 0 : index
    %c0_0 = arith.constant 0 : index
    %c0_1 = arith.constant 0 : index
    %0 = vector.load %arg1[%c0, %c0_0, %c0_1] : memref<1x256x128xf32, #tpu.memory_space<vmem>>, vector<1x256x128xf32>
    %1 = vector.shape_cast %0 : vector<1x256x128xf32> to vector<256x128xf32>
    %c0_2 = arith.constant 0 : index
    %c0_3 = arith.constant 0 : index
    %c0_4 = arith.constant 0 : index
    %2 = vector.load %arg2[%c0_2, %c0_3, %c0_4] : memref<1x256x256xf32, #tpu.memory_space<vmem>>, vector<1x256x256xf32>
    %3 = vector.shape_cast %2 : vector<1x256x256xf32> to vector<256x256xf32>
    %4 = arith.truncf %3 : vector<256x256xf32> to vector<256x256xbf16>
    %c0_5 = arith.constant 0 : index
    %c0_6 = arith.constant 0 : index
    %5 = vector.load %arg5[%c0_5, %c0_6] : memref<1x128xf32, #tpu.memory_space<vmem>>, vector<1x128xf32>
    %c0_7 = arith.constant 0 : index
    %c0_8 = arith.constant 0 : index
    %6 = vector.load %arg6[%c0_7, %c0_8] : memref<1x128xf32, #tpu.memory_space<vmem>>, vector<1x128xf32>
    %7 = arith.truncf %1 : vector<256x128xf32> to vector<256x128xbf16>
    %c0_9 = arith.constant 0 : index
    %c0_10 = arith.constant 0 : index
    %8 = vector.load %arg3[%c0_9, %c0_10] : memref<128x128xbf16, #tpu.memory_space<vmem>>, vector<128x128xbf16>
    %cst = arith.constant dense<0.000000e+00> : vector<256x128xf32>
    %9 = tpu.matmul %7, %8, %cst {dimension_numbers = #tpu.dot_dimension_numbers<[1], [0], [0], [1], [0, 0, 1, 1], [], []>} : vector<256x128xbf16>, vector<128x128xbf16>, vector<256x128xf32> -> vector<256x128xf32>
    %10 = arith.truncf %9 : vector<256x128xf32> to vector<256x128xbf16>
    %cst_11 = arith.constant dense<0.000000e+00> : vector<256x128xf32>
    %11 = tpu.matmul %4, %10, %cst_11 {dimension_numbers = #tpu.dot_dimension_numbers<[1], [0], [0], [1], [0, 0, 1, 1], [], []>} : vector<256x256xbf16>, vector<256x128xbf16>, vector<256x128xf32> -> vector<256x128xf32>
    %cst_12 = arith.constant dense<0.000000e+00> : vector<128xf32>
    %12 = vector.multi_reduction <add>, %11, %cst_12 [0] : vector<256x128xf32> to vector<128xf32>
    %13 = vector.shape_cast %12 : vector<128xf32> to vector<1x128xf32>
    %cst_13 = arith.constant 3.906250e-03 : f32
    %14 = vector.broadcast %cst_13 : f32 to vector<1x128xf32>
    %15 = arith.mulf %13, %14 : vector<1x128xf32>
    %16 = vector.broadcast %15 : vector<1x128xf32> to vector<256x128xf32>
    %17 = arith.subf %11, %16 : vector<256x128xf32>
    %18 = arith.mulf %17, %17 : vector<256x128xf32>
    %cst_14 = arith.constant dense<0.000000e+00> : vector<128xf32>
    %19 = vector.multi_reduction <add>, %18, %cst_14 [0] : vector<256x128xf32> to vector<128xf32>
    %20 = vector.shape_cast %19 : vector<128xf32> to vector<1x128xf32>
    %cst_15 = arith.constant 3.906250e-03 : f32
    %21 = vector.broadcast %cst_15 : f32 to vector<1x128xf32>
    %22 = arith.mulf %20, %21 : vector<1x128xf32>
    %cst_16 = arith.constant 9.99999974E-6 : f32
    %23 = vector.broadcast %cst_16 : f32 to vector<1x128xf32>
    %24 = arith.addf %22, %23 : vector<1x128xf32>
    %25 = math.rsqrt %24 : vector<1x128xf32>
    %26 = arith.mulf %5, %25 : vector<1x128xf32>
    %27 = vector.broadcast %26 : vector<1x128xf32> to vector<256x128xf32>
    %28 = arith.mulf %17, %27 : vector<256x128xf32>
    %29 = vector.broadcast %6 : vector<1x128xf32> to vector<256x128xf32>
    %30 = arith.addf %28, %29 : vector<256x128xf32>
    %cst_17 = arith.constant 0.000000e+00 : f32
    %31 = vector.broadcast %cst_17 : f32 to vector<256x128xf32>
    %32 = arith.maximumf %30, %31 : vector<256x128xf32>
    %33 = arith.truncf %32 : vector<256x128xf32> to vector<256x128xbf16>
    %c0_18 = arith.constant 0 : index
    %c0_19 = arith.constant 0 : index
    %34 = vector.load %arg4[%c0_18, %c0_19] : memref<128x128xbf16, #tpu.memory_space<vmem>>, vector<128x128xbf16>
    %cst_20 = arith.constant dense<0.000000e+00> : vector<256x128xf32>
    %35 = tpu.matmul %33, %34, %cst_20 {dimension_numbers = #tpu.dot_dimension_numbers<[1], [0], [0], [1], [0, 0, 1, 1], [], []>} : vector<256x128xbf16>, vector<128x128xbf16>, vector<256x128xf32> -> vector<256x128xf32>
    %36 = arith.truncf %35 : vector<256x128xf32> to vector<256x128xbf16>
    %cst_21 = arith.constant dense<0.000000e+00> : vector<256x128xf32>
    %37 = tpu.matmul %4, %36, %cst_21 {dimension_numbers = #tpu.dot_dimension_numbers<[1], [0], [0], [1], [0, 0, 1, 1], [], []>} : vector<256x256xbf16>, vector<256x128xbf16>, vector<256x128xf32> -> vector<256x128xf32>
    %cst_22 = arith.constant dense<0.000000e+00> : vector<128xf32>
    %38 = vector.multi_reduction <add>, %37, %cst_22 [0] : vector<256x128xf32> to vector<128xf32>
    %39 = vector.shape_cast %38 : vector<128xf32> to vector<1x128xf32>
    %cst_23 = arith.constant 3.906250e-03 : f32
    %40 = vector.broadcast %cst_23 : f32 to vector<1x128xf32>
    %41 = arith.mulf %39, %40 : vector<1x128xf32>
    %42 = vector.broadcast %41 : vector<1x128xf32> to vector<256x128xf32>
    %43 = arith.subf %37, %42 : vector<256x128xf32>
    %44 = arith.mulf %43, %43 : vector<256x128xf32>
    %cst_24 = arith.constant dense<0.000000e+00> : vector<128xf32>
    %45 = vector.multi_reduction <add>, %44, %cst_24 [0] : vector<256x128xf32> to vector<128xf32>
    %46 = vector.shape_cast %45 : vector<128xf32> to vector<1x128xf32>
    %cst_25 = arith.constant 3.906250e-03 : f32
    %47 = vector.broadcast %cst_25 : f32 to vector<1x128xf32>
    %48 = arith.mulf %46, %47 : vector<1x128xf32>
    %cst_26 = arith.constant 9.99999974E-6 : f32
    %49 = vector.broadcast %cst_26 : f32 to vector<1x128xf32>
    %50 = arith.addf %48, %49 : vector<1x128xf32>
    %51 = math.rsqrt %50 : vector<1x128xf32>
    %52 = arith.mulf %5, %51 : vector<1x128xf32>
    %53 = vector.broadcast %52 : vector<1x128xf32> to vector<256x128xf32>
    %54 = arith.mulf %43, %53 : vector<256x128xf32>
    %55 = vector.broadcast %6 : vector<1x128xf32> to vector<256x128xf32>
    %56 = arith.addf %54, %55 : vector<256x128xf32>
    %57 = arith.addf %56, %1 : vector<256x128xf32>
    %cst_27 = arith.constant 0.000000e+00 : f32
    %58 = vector.broadcast %cst_27 : f32 to vector<256x128xf32>
    %59 = arith.maximumf %57, %58 : vector<256x128xf32>
    %c0_28 = arith.constant 0 : index
    %c0_29 = arith.constant 0 : index
    %c0_30 = arith.constant 0 : index
    %60 = vector.load %arg7[%c0_28, %c0_29, %c0_30] : memref<1x256x128xf32, #tpu.memory_space<vmem>>, vector<1x256x128xf32>
    %61 = vector.shape_cast %60 : vector<1x256x128xf32> to vector<256x128xf32>
    %62 = vector.shape_cast %59 : vector<256x128xf32> to vector<1x256x128xf32>
    tpu.vector_store %arg7[%c0_28, %c0_29, %c0_30], %62 {strides = array<i32>} : memref<1x256x128xf32, #tpu.memory_space<vmem>>, vector<1x256x128xf32>,
    return
  }
  func.func @transform_0(%arg0: i32) -> (i32, i32, i32) {
    %c0_i32 = arith.constant 0 : i32
    %c0_i32_0 = arith.constant 0 : i32
    %c0_i32_1 = arith.constant 0 : i32
    return %arg0, %c0_i32, %c0_i32_0 : i32, i32, i32
  }
  func.func @transform_1(%arg0: i32) -> (i32, i32, i32) {
    %c0_i32 = arith.constant 0 : i32
    %c0_i32_0 = arith.constant 0 : i32
    %c0_i32_1 = arith.constant 0 : i32
    return %arg0, %c0_i32, %c0_i32_0 : i32, i32, i32
  }
  func.func @transform_2(%arg0: i32) -> (i32, i32) {
    %c0_i32 = arith.constant 0 : i32
    %c0_i32_0 = arith.constant 0 : i32
    %c0_i32_1 = arith.constant 0 : i32
    return %c0_i32, %c0_i32_0 : i32, i32
  }
  func.func @transform_3(%arg0: i32) -> (i32, i32) {
    %c0_i32 = arith.constant 0 : i32
    %c0_i32_0 = arith.constant 0 : i32
    %c0_i32_1 = arith.constant 0 : i32
    return %c0_i32, %c0_i32_0 : i32, i32
  }
  func.func @transform_4(%arg0: i32) -> (i32, i32) {
    %c0_i32 = arith.constant 0 : i32
    %c0_i32_0 = arith.constant 0 : i32
    %c0_i32_1 = arith.constant 0 : i32
    return %c0_i32, %c0_i32_0 : i32, i32
  }
  func.func @transform_5(%arg0: i32) -> (i32, i32) {
    %c0_i32 = arith.constant 0 : i32
    %c0_i32_0 = arith.constant 0 : i32
    %c0_i32_1 = arith.constant 0 : i32
    return %c0_i32, %c0_i32_0 : i32, i32
  }
  func.func @transform_6(%arg0: i32) -> (i32, i32, i32) {
    %c0_i32 = arith.constant 0 : i32
    %c0_i32_0 = arith.constant 0 : i32
    %c0_i32_1 = arith.constant 0 : i32
    return %arg0, %c0_i32, %c0_i32_0 : i32, i32, i32
  }
}

</mosaic_0001>

<llo_original>
// kernel: tpu_custom_call.1
$region0: #{tpu_custom_call.1}
  #allocation0 [shape = 'u32[]', space=smem, size = 0x4, offset = 0x4, fixed_abs, tag = 'smem constant byte address 0x4 - core index']
  #allocation1 [shape = 'u32[72,128]{1,0:T(1,128)}', space=vmem, size = 0x9000, scoped, tag = 'internal scratch']
  %s0 = inlined_call_operand.hbm [shape: f32[2,256,128], index: 0, kind: input, shape index: {}]
  %s1 = inlined_call_operand.hbm [shape: f32[2,256,256], index: 1, kind: input, shape index: {}]
  %s2 = inlined_call_operand.hbm [shape: bf16[128,128], index: 2, kind: input, shape index: {}]
  %s3 = inlined_call_operand.hbm [shape: bf16[128,128], index: 3, kind: input, shape index: {}]
  %s4 = inlined_call_operand.vmem [shape: f32[1,128], index: 4, kind: input, shape index: {}]
  %s5 = inlined_call_operand.vmem [shape: f32[1,128], index: 5, kind: input, shape index: {}]
  %s6 = inlined_call_operand.hbm [shape: f32[2,256,128], index: 6, kind: output, shape index: {}]
  %s7 = sld [smem:[#allocation0]]
  $region73: #{tpu_custom_call.1} parent=0
    _
  %s9 = ssub.s32 1, %s7
  %s10 = scalar_select 0, %s9, %s7
  $region1: #{tpu_custom_call.1} parent=0
    #allocation2 [shape = 'u8[262144]{0}', space=vmem, size = 0x40000, scoped, tag = 'input window, operand 0']
    #allocation3 [shape = 's32[2]{0}', space=sflag, size = 0x8, scoped, tag = 'scoped memory for tpu_custom_call.1']
    #allocation4 [shape = 's32[2]{0}', space=sflag, size = 0x8, scoped, tag = 'scoped memory for tpu_custom_call.1']
    #allocation5 [shape = 'u8[524288]{0}', space=vmem, size = 0x80000, scoped, tag = 'input window, operand 1']
    #allocation6 [shape = 's32[2]{0}', space=sflag, size = 0x8, scoped, tag = 'scoped memory for tpu_custom_call.1']
    #allocation7 [shape = 'u8[32768]{0}', space=vmem, size = 0x8000, scoped, tag = 'input window, operand 2, single buffered']
    #allocation8 [shape = 'u8[32768]{0}', space=vmem, size = 0x8000, scoped, tag = 'input window, operand 3, single buffered']
    #allocation9 [shape = 's32[1]{0}', space=sflag, size = 0x4, scoped, tag = 'scoped memory for tpu_custom_call.1']
    #allocation10 [shape = 'u8[262144]{0}', space=vmem, size = 0x40000, scoped, tag = 'output window, operand 0']
    %11 = vsyncpa [#allocation3], 0
    %s12 = scalar_lea.sflag [#allocation3], 1
    %13 = vsyncpa %s12, 0
    %14 = vsyncpa [#allocation6], 0
    %s15 = scalar_lea.sflag [#allocation6], 1
    %16 = vsyncpa %s15, 0
    %17 = vsyncpa [#allocation9], 0
    %18 = vsyncpa [#allocation4], 0
    %s19 = scalar_lea.sflag [#allocation4], 1
    %20 = vsyncpa %s19, 0
    loop: start=0, step=1, limit=4
    $region2: #{tpu_custom_call.1} parent=1 // loop_pre_header
      _
    $region3: #{tpu_custom_call.1} parent=1 // loop_header
      %s22 = sphi 0, %s26
      %p23 = scmp.ge.s32.totalorder %s22, 4
      %s32 = sphi 0, %s34
      %s35 = sphi 0, %s32
      %s36 = sphi 0, %s35
      %s52 = sphi 0, %s36
      %s58 = sphi 0, %s60
      %s61 = sphi 0, %s58
      %s62 = sphi 0, %s61
      %s78 = sphi 0, %s62
      %s82 = sphi 0, %s82
      %s84 = sphi 0, %s82
      %s85 = sphi 0, %s84
      %s99 = sphi 0, %s85
      %s103 = sphi 0, %s103
      %s105 = sphi 0, %s103
      %s106 = sphi 0, %s105
      %s120 = sphi 0, %s106
      %s124 = sphi 0, %s124
      %s126 = sphi 0, %s124
      %s127 = sphi 0, %s126
      %s141 = sphi 0, %s127
      %s145 = sphi 0, %s145
      %s147 = sphi 0, %s145
      %s148 = sphi 0, %s147
      %s162 = sphi 0, %s148
      %s168 = sphi 0, %s170
      %s171 = sphi 0, %s168
      %s172 = sphi 0, %s171
      %s188 = sphi 0, %s172
    $region4: #{tpu_custom_call.1} parent=1 // loop_header_branch
      %25 = sbr.rel (%p23) target = $region8
    $region5: #{tpu_custom_call.1} parent=1 // loop_body
      %s27 = ssub.s32 %s22, 1
      %s28 = ssub.s32 %s22, 2
      %s29 = sadd.s32 %s22, 1
      %s30 = ssub.s32 %s22, %s29
      %p31 = scmp.eq.s32.totalorder %s30, 0
      %s33 = sadd.s32 %s32, 1
      %s34 = scalar_select %p31, %s32, %s33
      %p37 = pneg %p31
      %p38 = scmp.eq.s32.totalorder %s22, 1
      %p39 = por %p37, %p38
      %p40 = scmp.ne.s32.totalorder %s32, %s35
      %p41 = scmp.eq.s32.totalorder %s22, 0
      %p42 = por %p40, %p41
      %p43 = scmp.ne.s32.totalorder %s32, %s35
      %p44 = scmp.eq.s32.totalorder %s27, 1
      %p45 = por %p43, %p44
      %p46 = scmp.ne.s32.totalorder %s35, %s36
      %p47 = scmp.eq.s32.totalorder %s27, 0
      %p48 = por %p46, %p47
      %p49 = scmp.ne.s32.totalorder %s35, %s36
      %p50 = scmp.eq.s32.totalorder %s28, 1
      %p51 = por %p49, %p50
      %p53 = scmp.ne.s32.totalorder %s36, %s52
      %p54 = scmp.eq.s32.totalorder %s28, 0
      %p55 = por %p53, %p54
      %s56 = ssub.s32 %s22, %s29
      %p57 = scmp.eq.s32.totalorder %s56, 0
      %s59 = sadd.s32 %s58, 1
      %s60 = scalar_select %p57, %s58, %s59
      %p63 = pneg %p57
      %p64 = scmp.eq.s32.totalorder %s22, 1
      %p65 = por %p63, %p64
      %p66 = scmp.ne.s32.totalorder %s58, %s61
      %p67 = scmp.eq.s32.totalorder %s22, 0
      %p68 = por %p66, %p67
      %p69 = scmp.ne.s32.totalorder %s58, %s61
      %p70 = scmp.eq.s32.totalorder %s27, 1
      %p71 = por %p69, %p70
      %p72 = scmp.ne.s32.totalorder %s61, %s62
      %p73 = scmp.eq.s32.totalorder %s27, 0
      %p74 = por %p72, %p73
      %p75 = scmp.ne.s32.totalorder %s61, %s62
      %p76 = scmp.eq.s32.totalorder %s28, 1
      %p77 = por %p75, %p76
      %p79 = scmp.ne.s32.totalorder %s62, %s78
      %p80 = scmp.eq.s32.totalorder %s28, 0
      %p81 = por %p79, %p80
      %s83 = sadd.s32 %s82, 1
      %p86 = scmp.eq.s32.totalorder %s22, 1
      %p87 = scmp.ne.s32.totalorder %s82, %s84
      %p88 = scmp.eq.s32.totalorder %s22, 0
      %p89 = por %p87, %p88
      %p90 = scmp.ne.s32.totalorder %s82, %s84
      %p91 = scmp.eq.s32.totalorder %s27, 1
      %p92 = por %p90, %p91
      %p93 = scmp.ne.s32.totalorder %s84, %s85
      %p94 = scmp.eq.s32.totalorder %s27, 0
      %p95 = por %p93, %p94
      %p96 = scmp.ne.s32.totalorder %s84, %s85
      %p97 = scmp.eq.s32.totalorder %s28, 1
      %p98 = por %p96, %p97
      %p100 = scmp.ne.s32.totalorder %s85, %s99
      %p101 = scmp.eq.s32.totalorder %s28, 0
      %p102 = por %p100, %p101
      %s104 = sadd.s32 %s103, 1
      %p107 = scmp.eq.s32.totalorder %s22, 1
      %p108 = scmp.ne.s32.totalorder %s103, %s105
      %p109 = scmp.eq.s32.totalorder %s22, 0
      %p110 = por %p108, %p109
      %p111 = scmp.ne.s32.totalorder %s103, %s105
      %p112 = scmp.eq.s32.totalorder %s27, 1
      %p113 = por %p111, %p112
      %p114 = scmp.ne.s32.totalorder %s105, %s106
      %p115 = scmp.eq.s32.totalorder %s27, 0
      %p116 = por %p114, %p115
      %p117 = scmp.ne.s32.totalorder %s105, %s106
      %p118 = scmp.eq.s32.totalorder %s28, 1
      %p119 = por %p117, %p118
      %p121 = scmp.ne.s32.totalorder %s106, %s120
      %p122 = scmp.eq.s32.totalorder %s28, 0
      %p123 = por %p121, %p122
      %s125 = sadd.s32 %s124, 1
      %p128 = scmp.eq.s32.totalorder %s22, 1
      %p129 = scmp.ne.s32.totalorder %s124, %s126
      %p130 = scmp.eq.s32.totalorder %s22, 0
      %p131 = por %p129, %p130
      %p132 = scmp.ne.s32.totalorder %s124, %s126
      %p133 = scmp.eq.s32.totalorder %s27, 1
      %p134 = por %p132, %p133
      %p135 = scmp.ne.s32.totalorder %s126, %s127
      %p136 = scmp.eq.s32.totalorder %s27, 0
      %p137 = por %p135, %p136
      %p138 = scmp.ne.s32.totalorder %s126, %s127
      %p139 = scmp.eq.s32.totalorder %s28, 1
      %p140 = por %p138, %p139
      %p142 = scmp.ne.s32.totalorder %s127, %s141
      %p143 = scmp.eq.s32.totalorder %s28, 0
      %p144 = por %p142, %p143
      %s146 = sadd.s32 %s145, 1
      %p149 = scmp.eq.s32.totalorder %s22, 1
      %p150 = scmp.ne.s32.totalorder %s145, %s147
      %p151 = scmp.eq.s32.totalorder %s22, 0
      %p152 = por %p150, %p151
      %p153 = scmp.ne.s32.totalorder %s145, %s147
      %p154 = scmp.eq.s32.totalorder %s27, 1
      %p155 = por %p153, %p154
      %p156 = scmp.ne.s32.totalorder %s147, %s148
      %p157 = scmp.eq.s32.totalorder %s27, 0
      %p158 = por %p156, %p157
      %p159 = scmp.ne.s32.totalorder %s147, %s148
      %p160 = scmp.eq.s32.totalorder %s28, 1
      %p161 = por %p159, %p160
      %p163 = scmp.ne.s32.totalorder %s148, %s162
      %p164 = scmp.eq.s32.totalorder %s28, 0
      %p165 = por %p163, %p164
      %s166 = ssub.s32 %s22, %s29
      %p167 = scmp.eq.s32.totalorder %s166, 0
      %s169 = sadd.s32 %s168, 1
      %s170 = scalar_select %p167, %s168, %s169
      %p173 = pneg %p167
      %p174 = scmp.eq.s32.totalorder %s22, 1
      %p175 = por %p173, %p174
      %p176 = scmp.ne.s32.totalorder %s168, %s171
      %p177 = scmp.eq.s32.totalorder %s22, 0
      %p178 = por %p176, %p177
      %p179 = scmp.ne.s32.totalorder %s168, %s171
      %p180 = scmp.eq.s32.totalorder %s27, 1
      %p181 = por %p179, %p180
      %p182 = scmp.ne.s32.totalorder %s171, %s172
      %p183 = scmp.eq.s32.totalorder %s27, 0
      %p184 = por %p182, %p183
      %p185 = scmp.ne.s32.totalorder %s171, %s172
      %p186 = scmp.eq.s32.totalorder %s28, 1
      %p187 = por %p185, %p186
      %p189 = scmp.ne.s32.totalorder %s172, %s188
      %p190 = scmp.eq.s32.totalorder %s28, 0
      %p191 = por %p189, %p190
      %p192 = scmp.le.s32.totalorder 1, %s22
      %p193 = scmp.lt.s32.totalorder %s22, 3
      %p194 = pnand %p192, %p193
      %p195 = pneg %p194
      // Predicated region
      $region9: #{tpu_custom_call.1} parent=5 // pred_check
        _
      $region10: #{tpu_custom_call.1} parent=5 // pred_check_branch
        %197 = sbr.rel (%p194) target = $region12
      $region11: #{tpu_custom_call.1} parent=5 // pred_region
        %s198 = ssub.s32 %s22, 1
        // Predicated region
        $region13: #{tpu_custom_call.1} parent=11 // pred_check
          %p199 = pneg %p95
        $region14: #{tpu_custom_call.1} parent=11 // pred_check_branch
          %201 = sbr.rel (%p199) target = $region16
        $region15: #{tpu_custom_call.1} parent=11 // pred_region
          %203 = vsyncadd [#allocation6], 0
          %s204 = sshll.u32 %s2, 4
          %s205 = int_to_ptr.hbm [resolvable:$true] %s204
          %s206 = sshll.u32 [#allocation7], 4
          %s207 = int_to_ptr.vmem [resolvable:$true] %s206
          %212 = dma.hbm_to_vmem [thread:$0]  %s205, 1024, %s207, [#allocation6], 64, 64, 4
        $region16: #{tpu_custom_call.1} parent=11 // pred_fallthru
          _
        // Predicated region
        $region17: #{tpu_custom_call.1} parent=11 // pred_check
          %p213 = pneg %p116
        $region18: #{tpu_custom_call.1} parent=11 // pred_check_branch
          %215 = sbr.rel (%p213) target = $region20
        $region19: #{tpu_custom_call.1} parent=11 // pred_region
          %217 = vsyncadd [#allocation9], 0
          %s218 = sshll.u32 %s3, 4
          %s219 = int_to_ptr.hbm [resolvable:$true] %s218
          %s220 = sshll.u32 [#allocation8], 4
          %s221 = int_to_ptr.vmem [resolvable:$true] %s220
          %226 = dma.hbm_to_vmem [thread:$0]  %s219, 1024, %s221, [#allocation9], 64, 64, 4
        $region20: #{tpu_custom_call.1} parent=11 // pred_fallthru
          _
        // Predicated region
        $region21: #{tpu_custom_call.1} parent=11 // pred_check
          %p227 = pneg %p137
        $region22: #{tpu_custom_call.1} parent=11 // pred_check_branch
          %229 = sbr.rel (%p227) target = $region24
        $region23: #{tpu_custom_call.1} parent=11 // pred_region
          _
        $region24: #{tpu_custom_call.1} parent=11 // pred_fallthru
          _
        // Predicated region
        $region25: #{tpu_custom_call.1} parent=11 // pred_check
          %p230 = pneg %p158
        $region26: #{tpu_custom_call.1} parent=11 // pred_check_branch
          %232 = sbr.rel (%p230) target = $region28
        $region27: #{tpu_custom_call.1} parent=11 // pred_region
          _
        $region28: #{tpu_custom_call.1} parent=11 // pred_fallthru
          _
      $region12: #{tpu_custom_call.1} parent=5 // pred_fallthru
        _
      %p233 = scmp.lt.s32.totalorder %s22, 2
      // Predicated region
      $region29: #{tpu_custom_call.1} parent=5 // pred_check
        %p234 = pneg %p233
      $region30: #{tpu_custom_call.1} parent=5 // pred_check_branch
        %236 = sbr.rel (%p234) target = $region32
      $region31: #{tpu_custom_call.1} parent=5 // pred_region
        // Predicated region
        $region33: #{tpu_custom_call.1} parent=31 // pred_check
          %p237 = pneg %p42
        $region34: #{tpu_custom_call.1} parent=31 // pred_check_branch
          %239 = sbr.rel (%p237) target = $region36
        $region35: #{tpu_custom_call.1} parent=31 // pred_region
          %s240 = sand.u32 %s32, 1
          %s241 = scalar_lea.sflag [#allocation3], %s240
          %s242 = sand.u32 %s32, 1
          %s243 = smul.addr %s242, 256
          %s244 = scalar_lea.vmem [#allocation2], %s243
          %246 = vsyncadd %s241, 0
          %s247 = smul.addr %s22, 32
          %s248 = smul.addr %s247, 8
          %s249 = scalar_lea.hbm %s0, %s248
          %s250 = sshll.u32 %s249, 4
          %s251 = int_to_ptr.hbm [resolvable:$true] %s250
          %s252 = sshll.u32 %s244, 4
          %s253 = int_to_ptr.vmem [resolvable:$true] %s252
          %258 = dma.hbm_to_vmem [thread:$0]  %s251, 4096, %s253, %s241, 128, 128, 8
        $region36: #{tpu_custom_call.1} parent=31 // pred_fallthru
          _
        // Predicated region
        $region37: #{tpu_custom_call.1} parent=31 // pred_check
          %p259 = pneg %p68
        $region38: #{tpu_custom_call.1} parent=31 // pred_check_branch
          %261 = sbr.rel (%p259) target = $region40
        $region39: #{tpu_custom_call.1} parent=31 // pred_region
          %s262 = sand.u32 %s22, 1
          %s263 = scalar_lea.sflag [#allocation6], %s262
          %s264 = sand.u32 %s58, 1
          %s265 = smul.addr %s264, 512
          %s266 = scalar_lea.vmem [#allocation5], %s265
          %268 = vsyncadd %s263, 0
          %s269 = smul.addr %s22, 64
          %s270 = smul.addr %s269, 8
          %s271 = scalar_lea.hbm %s1, %s270
          %s272 = sshll.u32 %s271, 4
          %s273 = int_to_ptr.hbm [resolvable:$true] %s272
          %s274 = sshll.u32 %s266, 4
          %s275 = int_to_ptr.vmem [resolvable:$true] %s274
          %280 = dma.hbm_to_vmem [thread:$0]  %s273, 8192, %s275, %s263, 256, 256, 16
        $region40: #{tpu_custom_call.1} parent=31 // pred_fallthru
          _
      $region32: #{tpu_custom_call.1} parent=5 // pred_fallthru
        _
      %p281 = scmp.le.s32.totalorder 1, %s22
      %p282 = scmp.lt.s32.totalorder %s22, 3
      %p283 = pnand %p281, %p282
      %p284 = pneg %p283
      // Predicated region
      $region41: #{tpu_custom_call.1} parent=5 // pred_check
        _
      $region42: #{tpu_custom_call.1} parent=5 // pred_check_branch
        %286 = sbr.rel (%p283) target = $region44
      $region43: #{tpu_custom_call.1} parent=5 // pred_region
        %s287 = ssub.s32 %s22, 1
        %s288 = sand.u32 %s35, 1
        %s289 = scalar_lea.sflag [#allocation3], %s288
        %s290 = sand.u32 %s35, 1
        %s291 = smul.addr %s290, 256
        %s292 = scalar_lea.vmem [#allocation2], %s291
        // Predicated region
        $region45: #{tpu_custom_call.1} parent=43 // pred_check
          %p293 = pneg %p48
        $region46: #{tpu_custom_call.1} parent=43 // pred_check_branch
          %295 = sbr.rel (%p293) target = $region48
        $region47: #{tpu_custom_call.1} parent=43 // pred_region
          %297 = dma.done %s289, 4096
        $region48: #{tpu_custom_call.1} parent=43 // pred_fallthru
          _
        %s298 = sand.u32 %s27, 1
        %s299 = scalar_lea.sflag [#allocation6], %s298
        %s300 = sand.u32 %s61, 1
        %s301 = smul.addr %s300, 512
        %s302 = scalar_lea.vmem [#allocation5], %s301
        // Predicated region
        $region49: #{tpu_custom_call.1} parent=43 // pred_check
          %p303 = pneg %p74
        $region50: #{tpu_custom_call.1} parent=43 // pred_check_branch
          %305 = sbr.rel (%p303) target = $region52
        $region51: #{tpu_custom_call.1} parent=43 // pred_region
          %307 = dma.done %s299, 8192
        $region52: #{tpu_custom_call.1} parent=43 // pred_fallthru
          _
        // Predicated region
        $region53: #{tpu_custom_call.1} parent=43 // pred_check
          %p308 = pneg %p95
        $region54: #{tpu_custom_call.1} parent=43 // pred_check_branch
          %310 = sbr.rel (%p308) target = $region56
        $region55: #{tpu_custom_call.1} parent=43 // pred_region
          %312 = dma.done [#allocation6], 1024
        $region56: #{tpu_custom_call.1} parent=43 // pred_fallthru
          _
        // Predicated region
        $region57: #{tpu_custom_call.1} parent=43 // pred_check
          %p313 = pneg %p116
        $region58: #{tpu_custom_call.1} parent=43 // pred_check_branch
          %315 = sbr.rel (%p313) target = $region60
        $region59: #{tpu_custom_call.1} parent=43 // pred_region
          %317 = dma.done [#allocation9], 1024
        $region60: #{tpu_custom_call.1} parent=43 // pred_fallthru
          _
        %s318 = sand.u32 %s35, 1
        %s319 = scalar_lea.sflag [#allocation3], %s318
        %s320 = sand.u32 %s35, 1
        %s321 = smul.addr %s320, 256
        %s322 = scalar_lea.vmem [#allocation2], %s321
        %p323 = pneg %p48
        %p324 = pneg %p45
        %s325 = sand.u32 %s27, 1
        %s326 = scalar_lea.sflag [#allocation6], %s325
        %s327 = sand.u32 %s61, 1
        %s328 = smul.addr %s327, 512
        %s329 = scalar_lea.vmem [#allocation5], %s328
        %p330 = pneg %p74
        %p331 = pneg %p71
        %p332 = pneg %p95
        %p333 = pneg %p92
        %p334 = pneg %p116
        %p335 = pneg %p113
        %p336 = pneg %p137
        %p337 = pneg %p134
        %p338 = pneg %p158
        %p339 = pneg %p155
        %p340 = pneg %p184
        %p341 = pneg %p181
        %s342 = sand.u32 %s171, 1
        %s343 = scalar_lea.sflag [#allocation4], %s342
        %s344 = sand.u32 %s171, 1
        %s345 = smul.addr %s344, 256
        %s346 = scalar_lea.vmem [#allocation10], %s345
        %v347 = vld [vmem:[%s292] sm:$0xff]
        %v348 = vld [vmem:[%s292 + $0x8] sm:$0xff]
        %v349 = vld [vmem:[%s292 + $0x10] sm:$0xff]
        %v350 = vld [vmem:[%s292 + $0x18] sm:$0xff]
        %v351 = vld [vmem:[%s292 + $0x20] sm:$0xff]
        %v352 = vld [vmem:[%s292 + $0x28] sm:$0xff]
        %v353 = vld [vmem:[%s292 + $0x30] sm:$0xff]
        %v354 = vld [vmem:[%s292 + $0x38] sm:$0xff]
        %v355 = vld [vmem:[%s292 + $0x40] sm:$0xff]
        %v356 = vld [vmem:[%s292 + $0x48] sm:$0xff]
        %v357 = vld [vmem:[%s292 + $0x50] sm:$0xff]
        %v358 = vld [vmem:[%s292 + $0x58] sm:$0xff]
        %v359 = vld [vmem:[%s292 + $0x60] sm:$0xff]
        %v360 = vld [vmem:[%s292 + $0x68] sm:$0xff]
        %v361 = vld [vmem:[%s292 + $0x70] sm:$0xff]
        %v362 = vld [vmem:[%s292 + $0x78] sm:$0xff]
        %v363 = vld [vmem:[%s292 + $0x80] sm:$0xff]
        %v364 = vld [vmem:[%s292 + $0x88] sm:$0xff]
        %v365 = vld [vmem:[%s292 + $0x90] sm:$0xff]
        %v366 = vld [vmem:[%s292 + $0x98] sm:$0xff]
        %v367 = vld [vmem:[%s292 + $0xa0] sm:$0xff]
        %v368 = vld [vmem:[%s292 + $0xa8] sm:$0xff]
        %v369 = vld [vmem:[%s292 + $0xb0] sm:$0xff]
        %v370 = vld [vmem:[%s292 + $0xb8] sm:$0xff]
        %v371 = vld [vmem:[%s292 + $0xc0] sm:$0xff]
        %v372 = vld [vmem:[%s292 + $0xc8] sm:$0xff]
        %v373 = vld [vmem:[%s292 + $0xd0] sm:$0xff]
        %v374 = vld [vmem:[%s292 + $0xd8] sm:$0xff]
        %v375 = vld [vmem:[%s292 + $0xe0] sm:$0xff]
        %v376 = vld [vmem:[%s292 + $0xe8] sm:$0xff]
        %v377 = vld [vmem:[%s292 + $0xf0] sm:$0xff]
        %v378 = vld [vmem:[%s292 + $0xf8] sm:$0xff]
        %v379 = vld [vmem:[%s302] sm:$0xff]
        %v380 = vld [vmem:[%s302 + $0x8] sm:$0xff]
        %v381 = vld [vmem:[%s302 + $0x10] sm:$0xff]
        %v382 = vld [vmem:[%s302 + $0x18] sm:$0xff]
        %v383 = vld [vmem:[%s302 + $0x20] sm:$0xff]
        %v384 = vld [vmem:[%s302 + $0x28] sm:$0xff]
        %v385 = vld [vmem:[%s302 + $0x30] sm:$0xff]
        %v386 = vld [vmem:[%s302 + $0x38] sm:$0xff]
        %v387 = vld [vmem:[%s302 + $0x40] sm:$0xff]
        %v388 = vld [vmem:[%s302 + $0x48] sm:$0xff]
        %v389 = vld [vmem:[%s302 + $0x50] sm:$0xff]
        %v390 = vld [vmem:[%s302 + $0x58] sm:$0xff]
        %v391 = vld [vmem:[%s302 + $0x60] sm:$0xff]
        %v392 = vld [vmem:[%s302 + $0x68] sm:$0xff]
        %v393 = vld [vmem:[%s302 + $0x70] sm:$0xff]
        %v394 = vld [vmem:[%s302 + $0x78] sm:$0xff]
        %v395 = vld [vmem:[%s302 + $0x80] sm:$0xff]
        %v396 = vld [vmem:[%s302 + $0x88] sm:$0xff]
        %v397 = vld [vmem:[%s302 + $0x90] sm:$0xff]
        %v398 = vld [vmem:[%s302 + $0x98] sm:$0xff]
        %v399 = vld [vmem:[%s302 + $0xa0] sm:$0xff]
        %v400 = vld [vmem:[%s302 + $0xa8] sm:$0xff]
        %v401 = vld [vmem:[%s302 + $0xb0] sm:$0xff]
        %v402 = vld [vmem:[%s302 + $0xb8] sm:$0xff]
        %v403 = vld [vmem:[%s302 + $0xc0] sm:$0xff]
        %v404 = vld [vmem:[%s302 + $0xc8] sm:$0xff]
        %v405 = vld [vmem:[%s302 + $0xd0] sm:$0xff]
        %v406 = vld [vmem:[%s302 + $0xd8] sm:$0xff]
        %v407 = vld [vmem:[%s302 + $0xe0] sm:$0xff]
        %v408 = vld [vmem:[%s302 + $0xe8] sm:$0xff]
        %v409 = vld [vmem:[%s302 + $0xf0] sm:$0xff]
        %v410 = vld [vmem:[%s302 + $0xf8] sm:$0xff]
        %v411 = vld [vmem:[%s302 + $0x100] sm:$0xff]
        %v412 = vld [vmem:[%s302 + $0x108] sm:$0xff]
        %v413 = vld [vmem:[%s302 + $0x110] sm:$0xff]
        %v414 = vld [vmem:[%s302 + $0x118] sm:$0xff]
        %v415 = vld [vmem:[%s302 + $0x120] sm:$0xff]
        %v416 = vld [vmem:[%s302 + $0x128] sm:$0xff]
        %v417 = vld [vmem:[%s302 + $0x130] sm:$0xff]
        %v418 = vld [vmem:[%s302 + $0x138] sm:$0xff]
        %v419 = vld [vmem:[%s302 + $0x140] sm:$0xff]
        %v420 = vld [vmem:[%s302 + $0x148] sm:$0xff]
        %v421 = vld [vmem:[%s302 + $0x150] sm:$0xff]
        %v422 = vld [vmem:[%s302 + $0x158] sm:$0xff]
        %v423 = vld [vmem:[%s302 + $0x160] sm:$0xff]
        %v424 = vld [vmem:[%s302 + $0x168] sm:$0xff]
        %v425 = vld [vmem:[%s302 + $0x170] sm:$0xff]
        %v426 = vld [vmem:[%s302 + $0x178] sm:$0xff]
        %v427 = vld [vmem:[%s302 + $0x180] sm:$0xff]
        %v428 = vld [vmem:[%s302 + $0x188] sm:$0xff]
        %v429 = vld [vmem:[%s302 + $0x190] sm:$0xff]
        %v430 = vld [vmem:[%s302 + $0x198] sm:$0xff]
        %v431 = vld [vmem:[%s302 + $0x1a0] sm:$0xff]
        %v432 = vld [vmem:[%s302 + $0x1a8] sm:$0xff]
        %v433 = vld [vmem:[%s302 + $0x1b0] sm:$0xff]
        %v434 = vld [vmem:[%s302 + $0x1b8] sm:$0xff]
        %v435 = vld [vmem:[%s302 + $0x1c0] sm:$0xff]
        %v436 = vld [vmem:[%s302 + $0x1c8] sm:$0xff]
        %v437 = vld [vmem:[%s302 + $0x1d0] sm:$0xff]
        %v438 = vld [vmem:[%s302 + $0x1d8] sm:$0xff]
        %v439 = vld [vmem:[%s302 + $0x1e0] sm:$0xff]
        %v440 = vld [vmem:[%s302 + $0x1e8] sm:$0xff]
        %v441 = vld [vmem:[%s302 + $0x1f0] sm:$0xff]
        %v442 = vld [vmem:[%s302 + $0x1f8] sm:$0xff]
        %v443 = vpack.c.bf16 %v381, %v379
        %v444 = vpack.c.bf16 %v382, %v380
        %v445 = vpack.c.bf16 %v385, %v383
        %v446 = vpack.c.bf16 %v386, %v384
        %v447 = vpack.c.bf16 %v389, %v387
        %v448 = vpack.c.bf16 %v390, %v388
        %v449 = vpack.c.bf16 %v393, %v391
        %v450 = vpack.c.bf16 %v394, %v392
        %v451 = vpack.c.bf16 %v397, %v395
        %v452 = vpack.c.bf16 %v398, %v396
        %v453 = vpack.c.bf16 %v401, %v399
        %v454 = vpack.c.bf16 %v402, %v400
        %v455 = vpack.c.bf16 %v405, %v403
        %v456 = vpack.c.bf16 %v406, %v404
        %v457 = vpack.c.bf16 %v409, %v407
        %v458 = vpack.c.bf16 %v410, %v408
        %v459 = vpack.c.bf16 %v413, %v411
        %v460 = vpack.c.bf16 %v414, %v412
        %v461 = vpack.c.bf16 %v417, %v415
        %v462 = vpack.c.bf16 %v418, %v416
        %v463 = vpack.c.bf16 %v421, %v419
        %v464 = vpack.c.bf16 %v422, %v420
        %v465 = vpack.c.bf16 %v425, %v423
        %v466 = vpack.c.bf16 %v426, %v424
        %v467 = vpack.c.bf16 %v429, %v427
        %v468 = vpack.c.bf16 %v430, %v428
        %v469 = vpack.c.bf16 %v433, %v431
        %v470 = vpack.c.bf16 %v434, %v432
        %v471 = vpack.c.bf16 %v437, %v435
        %v472 = vpack.c.bf16 %v438, %v436
        %v473 = vpack.c.bf16 %v441, %v439
        %v474 = vpack.c.bf16 %v442, %v440
        %v475 = vld [vmem:[%s4] sm:$0x1]
        %v476 = vld [vmem:[%s5] sm:$0x1]
        %v477 = vpack.c.bf16 %v348, %v347
        %v478 = vpack.c.bf16 %v350, %v349
        %v479 = vpack.c.bf16 %v352, %v351
        %v480 = vpack.c.bf16 %v354, %v353
        %v481 = vpack.c.bf16 %v356, %v355
        %v482 = vpack.c.bf16 %v358, %v357
        %v483 = vpack.c.bf16 %v360, %v359
        %v484 = vpack.c.bf16 %v362, %v361
        %v485 = vpack.c.bf16 %v364, %v363
        %v486 = vpack.c.bf16 %v366, %v365
        %v487 = vpack.c.bf16 %v368, %v367
        %v488 = vpack.c.bf16 %v370, %v369
        %v489 = vpack.c.bf16 %v372, %v371
        %v490 = vpack.c.bf16 %v374, %v373
        %v491 = vpack.c.bf16 %v376, %v375
        %v492 = vpack.c.bf16 %v378, %v377
        %v493 = vld [vmem:[#allocation7] sm:$0xf]
        %v494 = vld [vmem:[#allocation7 + $0x4] sm:$0xf]
        %v495 = vld [vmem:[#allocation7 + $0x8] sm:$0xf]
        %v496 = vld [vmem:[#allocation7 + $0xc] sm:$0xf]
        %v497 = vld [vmem:[#allocation7 + $0x10] sm:$0xf]
        %v498 = vld [vmem:[#allocation7 + $0x14] sm:$0xf]
        %v499 = vld [vmem:[#allocation7 + $0x18] sm:$0xf]
        %v500 = vld [vmem:[#allocation7 + $0x1c] sm:$0xf]
        %v501 = vld [vmem:[#allocation7 + $0x20] sm:$0xf]
        %v502 = vld [vmem:[#allocation7 + $0x24] sm:$0xf]
        %v503 = vld [vmem:[#allocation7 + $0x28] sm:$0xf]
        %v504 = vld [vmem:[#allocation7 + $0x2c] sm:$0xf]
        %v505 = vld [vmem:[#allocation7 + $0x30] sm:$0xf]
        %v506 = vld [vmem:[#allocation7 + $0x34] sm:$0xf]
        %v507 = vld [vmem:[#allocation7 + $0x38] sm:$0xf]
        %v508 = vld [vmem:[#allocation7 + $0x3c] sm:$0xf]
        %v525 = vunpack.c.l.b16 %v493
        %v526 = vunpack.c.l.b16 %v494
        %v527 = vunpack.c.l.b16 %v495
        %v528 = vunpack.c.l.b16 %v496
        %v529 = vunpack.c.l.b16 %v497
        %v530 = vunpack.c.l.b16 %v498
        %v531 = vunpack.c.l.b16 %v499
        %v532 = vunpack.c.l.b16 %v500
        %v533 = vunpack.c.l.b16 %v501
        %v534 = vunpack.c.l.b16 %v502
        %v535 = vunpack.c.l.b16 %v503
        %v536 = vunpack.c.l.b16 %v504
        %v537 = vunpack.c.l.b16 %v505
        %v538 = vunpack.c.l.b16 %v506
        %v539 = vunpack.c.l.b16 %v507
        %v540 = vunpack.c.l.b16 %v508
        %v541 = vpack.c.b16 %v526, %v525
        %v542 = vpack.c.b16 %v528, %v527
        %v543 = vpack.c.b16 %v530, %v529
        %v544 = vpack.c.b16 %v532, %v531
        %v545 = vpack.c.b16 %v534, %v533
        %v546 = vpack.c.b16 %v536, %v535
        %v547 = vpack.c.b16 %v538, %v537
        %v548 = vpack.c.b16 %v540, %v539
        %557 = vmatpush.bf16.msra.mxu0 %v548
        %558 = vmatpush.bf16.msra.mxu0 %v547
        %559 = vmatpush.bf16.msra.mxu0 %v546
        %560 = vmatpush.bf16.msra.mxu0 %v545
        %561 = vmatpush.bf16.msra.mxu0 %v544
        %562 = vmatpush.bf16.msra.mxu0 %v543
        %563 = vmatpush.bf16.msra.mxu0 %v542
        %564 = vmatpush.bf16.msra.mxu0 %v541
        %565 = vmatmul.bf16.gmra.mxu0 %v477
        %v566 = vpop.f32.mrf.mxu0
        %v567 = vadd.f32 0.0, %v566
        %v568 = vpop.f32.mrf.mxu0
        %v569 = vadd.f32 0.0, %v568
        %570 = vmatmul.bf16.gmra.mxu0 %v478
        %v571 = vpop.f32.mrf.mxu0
        %v572 = vadd.f32 0.0, %v571
        %v573 = vpop.f32.mrf.mxu0
        %v574 = vadd.f32 0.0, %v573
        %575 = vmatmul.bf16.gmra.mxu0 %v479
        %v576 = vpop.f32.mrf.mxu0
        %v577 = vadd.f32 0.0, %v576
        %v578 = vpop.f32.mrf.mxu0
        %v579 = vadd.f32 0.0, %v578
        %580 = vmatmul.bf16.gmra.mxu0 %v480
        %v581 = vpop.f32.mrf.mxu0
        %v582 = vadd.f32 0.0, %v581
        %v583 = vpop.f32.mrf.mxu0
        %v584 = vadd.f32 0.0, %v583
        %585 = vmatmul.bf16.gmra.mxu0 %v481
        %v586 = vpop.f32.mrf.mxu0
        %v587 = vadd.f32 0.0, %v586
        %v588 = vpop.f32.mrf.mxu0
        %v589 = vadd.f32 0.0, %v588
        %590 = vmatmul.bf16.gmra.mxu0 %v482
        %v591 = vpop.f32.mrf.mxu0
        %v592 = vadd.f32 0.0, %v591
        %v593 = vpop.f32.mrf.mxu0
        %v594 = vadd.f32 0.0, %v593
        %595 = vmatmul.bf16.gmra.mxu0 %v483
        %v596 = vpop.f32.mrf.mxu0
        %v597 = vadd.f32 0.0, %v596
        %v598 = vpop.f32.mrf.mxu0
        %v599 = vadd.f32 0.0, %v598
        %600 = vmatmul.bf16.gmra.mxu0 %v484
        %v601 = vpop.f32.mrf.mxu0
        %v602 = vadd.f32 0.0, %v601
        %v603 = vpop.f32.mrf.mxu0
        %v604 = vadd.f32 0.0, %v603
        %605 = vmatmul.bf16.gmra.mxu0 %v485
        %v606 = vpop.f32.mrf.mxu0
        %v607 = vadd.f32 0.0, %v606
        %v608 = vpop.f32.mrf.mxu0
        %v609 = vadd.f32 0.0, %v608
        %610 = vmatmul.bf16.gmra.mxu0 %v486
        %v611 = vpop.f32.mrf.mxu0
        %v612 = vadd.f32 0.0, %v611
        %v613 = vpop.f32.mrf.mxu0
        %v614 = vadd.f32 0.0, %v613
        %615 = vmatmul.bf16.gmra.mxu0 %v487
        %v616 = vpop.f32.mrf.mxu0
        %v617 = vadd.f32 0.0, %v616
        %v618 = vpop.f32.mrf.mxu0
        %v619 = vadd.f32 0.0, %v618
        %620 = vmatmul.bf16.gmra.mxu0 %v488
        %v621 = vpop.f32.mrf.mxu0
        %v622 = vadd.f32 0.0, %v621
        %v623 = vpop.f32.mrf.mxu0
        %v624 = vadd.f32 0.0, %v623
        %625 = vmatmul.bf16.gmra.mxu0 %v489
        %v626 = vpop.f32.mrf.mxu0
        %v627 = vadd.f32 0.0, %v626
        %v628 = vpop.f32.mrf.mxu0
        %v629 = vadd.f32 0.0, %v628
        %630 = vmatmul.bf16.gmra.mxu0 %v490
        %v631 = vpop.f32.mrf.mxu0
        %v632 = vadd.f32 0.0, %v631
        %v633 = vpop.f32.mrf.mxu0
        %v634 = vadd.f32 0.0, %v633
        %635 = vmatmul.bf16.gmra.mxu0 %v491
        %v636 = vpop.f32.mrf.mxu0
        %v637 = vadd.f32 0.0, %v636
        %v638 = vpop.f32.mrf.mxu0
        %v639 = vadd.f32 0.0, %v638
        %640 = vmatmul.bf16.gmra.mxu0 %v492
        %v641 = vpop.f32.mrf.mxu0
        %v642 = vadd.f32 0.0, %v641
        %v643 = vpop.f32.mrf.mxu0
        %v644 = vadd.f32 0.0, %v643
        %645 = vdwg.mxu0
        %v646 = vpack.c.bf16 %v569, %v567
        %v647 = vpack.c.bf16 %v574, %v572
        %v648 = vpack.c.bf16 %v579, %v577
        %v649 = vpack.c.bf16 %v584, %v582
        %v650 = vpack.c.bf16 %v589, %v587
        %v651 = vpack.c.bf16 %v594, %v592
        %v652 = vpack.c.bf16 %v599, %v597
        %v653 = vpack.c.bf16 %v604, %v602
        %v654 = vpack.c.bf16 %v609, %v607
        %v655 = vpack.c.bf16 %v614, %v612
        %v656 = vpack.c.bf16 %v619, %v617
        %v657 = vpack.c.bf16 %v624, %v622
        %v658 = vpack.c.bf16 %v629, %v627
        %v659 = vpack.c.bf16 %v634, %v632
        %v660 = vpack.c.bf16 %v639, %v637
        %v661 = vpack.c.bf16 %v644, %v642
        %662 = vmatpush.bf16.msra.mxu0 %v653
        %663 = vmatpush.bf16.msra.mxu0 %v652
        %664 = vmatpush.bf16.msra.mxu0 %v651
        %665 = vmatpush.bf16.msra.mxu0 %v650
        %666 = vmatpush.bf16.msra.mxu0 %v649
        %667 = vmatpush.bf16.msra.mxu0 %v648
        %668 = vmatpush.bf16.msra.mxu0 %v647
        %669 = vmatpush.bf16.msra.mxu0 %v646
        %670 = vmatmul.bf16.gmra.mxu0 %v443
        %v671 = vpop.f32.mrf.mxu0
        %v672 = vadd.f32 0.0, %v671
        %v673 = vpop.f32.mrf.mxu0
        %v674 = vadd.f32 0.0, %v673
        %675 = vmatmul.bf16.gmra.mxu0 %v445
        %v676 = vpop.f32.mrf.mxu0
        %v677 = vadd.f32 0.0, %v676
        %v678 = vpop.f32.mrf.mxu0
        %v679 = vadd.f32 0.0, %v678
        %680 = vmatmul.bf16.gmra.mxu0 %v447
        %v681 = vpop.f32.mrf.mxu0
        %v682 = vadd.f32 0.0, %v681
        %v683 = vpop.f32.mrf.mxu0
        %v684 = vadd.f32 0.0, %v683
        %685 = vmatmul.bf16.gmra.mxu0 %v449
        %v686 = vpop.f32.mrf.mxu0
        %v687 = vadd.f32 0.0, %v686
        %v688 = vpop.f32.mrf.mxu0
        %v689 = vadd.f32 0.0, %v688
        %690 = vmatmul.bf16.gmra.mxu0 %v451
        %v691 = vpop.f32.mrf.mxu0
        %v692 = vadd.f32 0.0, %v691
        %v693 = vpop.f32.mrf.mxu0
        %v694 = vadd.f32 0.0, %v693
        %695 = vmatmul.bf16.gmra.mxu0 %v453
        %v696 = vpop.f32.mrf.mxu0
        %v697 = vadd.f32 0.0, %v696
        %v698 = vpop.f32.mrf.mxu0
        %v699 = vadd.f32 0.0, %v698
        %700 = vmatmul.bf16.gmra.mxu0 %v455
        %v701 = vpop.f32.mrf.mxu0
        %v702 = vadd.f32 0.0, %v701
        %v703 = vpop.f32.mrf.mxu0
        %v704 = vadd.f32 0.0, %v703
        %705 = vmatmul.bf16.gmra.mxu0 %v457
        %v706 = vpop.f32.mrf.mxu0
        %v707 = vadd.f32 0.0, %v706
        %v708 = vpop.f32.mrf.mxu0
        %v709 = vadd.f32 0.0, %v708
        %710 = vmatmul.bf16.gmra.mxu0 %v459
        %v711 = vpop.f32.mrf.mxu0
        %v712 = vadd.f32 0.0, %v711
        %v713 = vpop.f32.mrf.mxu0
        %v714 = vadd.f32 0.0, %v713
        %715 = vmatmul.bf16.gmra.mxu0 %v461
        %v716 = vpop.f32.mrf.mxu0
        %v717 = vadd.f32 0.0, %v716
        %v718 = vpop.f32.mrf.mxu0
        %v719 = vadd.f32 0.0, %v718
        %720 = vmatmul.bf16.gmra.mxu0 %v463
        %v721 = vpop.f32.mrf.mxu0
        %v722 = vadd.f32 0.0, %v721
        %v723 = vpop.f32.mrf.mxu0
        %v724 = vadd.f32 0.0, %v723
        %725 = vmatmul.bf16.gmra.mxu0 %v465
        %v726 = vpop.f32.mrf.mxu0
        %v727 = vadd.f32 0.0, %v726
        %v728 = vpop.f32.mrf.mxu0
        %v729 = vadd.f32 0.0, %v728
        %730 = vmatmul.bf16.gmra.mxu0 %v467
        %v731 = vpop.f32.mrf.mxu0
        %v732 = vadd.f32 0.0, %v731
        %v733 = vpop.f32.mrf.mxu0
        %v734 = vadd.f32 0.0, %v733
        %735 = vmatmul.bf16.gmra.mxu0 %v469
        %v736 = vpop.f32.mrf.mxu0
        %v737 = vadd.f32 0.0, %v736
        %v738 = vpop.f32.mrf.mxu0
        %v739 = vadd.f32 0.0, %v738
        %740 = vmatmul.bf16.gmra.mxu0 %v471
        %v741 = vpop.f32.mrf.mxu0
        %v742 = vadd.f32 0.0, %v741
        %v743 = vpop.f32.mrf.mxu0
        %v744 = vadd.f32 0.0, %v743
        %745 = vmatmul.bf16.gmra.mxu0 %v473
        %v746 = vpop.f32.mrf.mxu0
        %v747 = vadd.f32 0.0, %v746
        %v748 = vpop.f32.mrf.mxu0
        %v749 = vadd.f32 0.0, %v748
        %750 = vdwg.mxu0
        %751 = vmatpush.bf16.msra.mxu0 %v661
        %752 = vmatpush.bf16.msra.mxu0 %v660
        %753 = vmatpush.bf16.msra.mxu0 %v659
        %754 = vmatpush.bf16.msra.mxu0 %v658
        %755 = vmatpush.bf16.msra.mxu0 %v657
        %756 = vmatpush.bf16.msra.mxu0 %v656
        %757 = vmatpush.bf16.msra.mxu0 %v655
        %758 = vmatpush.bf16.msra.mxu0 %v654
        %759 = vmatmul.bf16.gmra.mxu0 %v444
        %v760 = vpop.f32.mrf.mxu0
        %v761 = vadd.f32 %v672, %v760
        %v762 = vpop.f32.mrf.mxu0
        %v763 = vadd.f32 %v674, %v762
        %764 = vmatmul.bf16.gmra.mxu0 %v446
        %v765 = vpop.f32.mrf.mxu0
        %v766 = vadd.f32 %v677, %v765
        %v767 = vpop.f32.mrf.mxu0
        %v768 = vadd.f32 %v679, %v767
        %769 = vmatmul.bf16.gmra.mxu0 %v448
        %v770 = vpop.f32.mrf.mxu0
        %v771 = vadd.f32 %v682, %v770
        %v772 = vpop.f32.mrf.mxu0
        %v773 = vadd.f32 %v684, %v772
        %774 = vmatmul.bf16.gmra.mxu0 %v450
        %v775 = vpop.f32.mrf.mxu0
        %v776 = vadd.f32 %v687, %v775
        %v777 = vpop.f32.mrf.mxu0
        %v778 = vadd.f32 %v689, %v777
        %779 = vmatmul.bf16.gmra.mxu0 %v452
        %v780 = vpop.f32.mrf.mxu0
        %v781 = vadd.f32 %v692, %v780
        %v782 = vpop.f32.mrf.mxu0
        %v783 = vadd.f32 %v694, %v782
        %784 = vmatmul.bf16.gmra.mxu0 %v454
        %v785 = vpop.f32.mrf.mxu0
        %v786 = vadd.f32 %v697, %v785
        %v787 = vpop.f32.mrf.mxu0
        %v788 = vadd.f32 %v699, %v787
        %789 = vmatmul.bf16.gmra.mxu0 %v456
        %v790 = vpop.f32.mrf.mxu0
        %v791 = vadd.f32 %v702, %v790
        %v792 = vpop.f32.mrf.mxu0
        %v793 = vadd.f32 %v704, %v792
        %794 = vmatmul.bf16.gmra.mxu0 %v458
        %v795 = vpop.f32.mrf.mxu0
        %v796 = vadd.f32 %v707, %v795
        %v797 = vpop.f32.mrf.mxu0
        %v798 = vadd.f32 %v709, %v797
        %799 = vmatmul.bf16.gmra.mxu0 %v460
        %v800 = vpop.f32.mrf.mxu0
        %v801 = vadd.f32 %v712, %v800
        %v802 = vpop.f32.mrf.mxu0
        %v803 = vadd.f32 %v714, %v802
        %804 = vmatmul.bf16.gmra.mxu0 %v462
        %v805 = vpop.f32.mrf.mxu0
        %v806 = vadd.f32 %v717, %v805
        %v807 = vpop.f32.mrf.mxu0
        %v808 = vadd.f32 %v719, %v807
        %809 = vmatmul.bf16.gmra.mxu0 %v464
        %v810 = vpop.f32.mrf.mxu0
        %v811 = vadd.f32 %v722, %v810
        %v812 = vpop.f32.mrf.mxu0
        %v813 = vadd.f32 %v724, %v812
        %814 = vmatmul.bf16.gmra.mxu0 %v466
        %v815 = vpop.f32.mrf.mxu0
        %v816 = vadd.f32 %v727, %v815
        %v817 = vpop.f32.mrf.mxu0
        %v818 = vadd.f32 %v729, %v817
        %819 = vmatmul.bf16.gmra.mxu0 %v468
        %v820 = vpop.f32.mrf.mxu0
        %v821 = vadd.f32 %v732, %v820
        %v822 = vpop.f32.mrf.mxu0
        %v823 = vadd.f32 %v734, %v822
        %824 = vmatmul.bf16.gmra.mxu0 %v470
        %v825 = vpop.f32.mrf.mxu0
        %v826 = vadd.f32 %v737, %v825
        %v827 = vpop.f32.mrf.mxu0
        %v828 = vadd.f32 %v739, %v827
        %829 = vmatmul.bf16.gmra.mxu0 %v472
        %v830 = vpop.f32.mrf.mxu0
        %v831 = vadd.f32 %v742, %v830
        %v832 = vpop.f32.mrf.mxu0
        %v833 = vadd.f32 %v744, %v832
        %834 = vmatmul.bf16.gmra.mxu0 %v474
        %v835 = vpop.f32.mrf.mxu0
        %v836 = vadd.f32 %v747, %v835
        %v837 = vpop.f32.mrf.mxu0
        %v838 = vadd.f32 %v749, %v837
        %839 = vdwg.mxu0
        %v840 = vadd.f32 %v761, %v763
        %v841 = vadd.f32 %v840, %v766
        %v842 = vadd.f32 %v841, %v768
        %v843 = vadd.f32 %v842, %v771
        %v844 = vadd.f32 %v843, %v773
        %v845 = vadd.f32 %v844, %v776
        %v846 = vadd.f32 %v845, %v778
        %v847 = vadd.f32 %v846, %v781
        %v848 = vadd.f32 %v847, %v783
        %v849 = vadd.f32 %v848, %v786
        %v850 = vadd.f32 %v849, %v788
        %v851 = vadd.f32 %v850, %v791
        %v852 = vadd.f32 %v851, %v793
        %v853 = vadd.f32 %v852, %v796
        %v854 = vadd.f32 %v853, %v798
        %v855 = vadd.f32 %v854, %v801
        %v856 = vadd.f32 %v855, %v803
        %v857 = vadd.f32 %v856, %v806
        %v858 = vadd.f32 %v857, %v808
        %v859 = vadd.f32 %v858, %v811
        %v860 = vadd.f32 %v859, %v813
        %v861 = vadd.f32 %v860, %v816
        %v862 = vadd.f32 %v861, %v818
        %v863 = vadd.f32 %v862, %v821
        %v864 = vadd.f32 %v863, %v823
        %v865 = vadd.f32 %v864, %v826
        %v866 = vadd.f32 %v865, %v828
        %v867 = vadd.f32 %v866, %v831
        %v868 = vadd.f32 %v867, %v833
        %v869 = vadd.f32 %v868, %v836
        %v870 = vadd.f32 %v869, %v838
        %v871 = vrot.slane %v870, 4
        %v872 = vadd.f32 %v870, %v871
        %v873 = vrot.slane %v872, 2
        %v874 = vadd.f32 %v872, %v873
        %v875 = vrot.slane %v874, 1
        %v876 = vadd.f32 %v874, %v875
        %v877 = vmul.f32 %v876, 0.00390625
        %v878 = vsub.f32 %v761, %v877
        %v879 = vsub.f32 %v763, %v877
        %v880 = vsub.f32 %v766, %v877
        %v881 = vsub.f32 %v768, %v877
        %v882 = vsub.f32 %v771, %v877
        %v883 = vsub.f32 %v773, %v877
        %v884 = vsub.f32 %v776, %v877
        %v885 = vsub.f32 %v778, %v877
        %v886 = vsub.f32 %v781, %v877
        %v887 = vsub.f32 %v783, %v877
        %v888 = vsub.f32 %v786, %v877
        %v889 = vsub.f32 %v788, %v877
        %v890 = vsub.f32 %v791, %v877
        %v891 = vsub.f32 %v793, %v877
        %v892 = vsub.f32 %v796, %v877
        %v893 = vsub.f32 %v798, %v877
        %v894 = vsub.f32 %v801, %v877
        %v895 = vsub.f32 %v803, %v877
        %v896 = vsub.f32 %v806, %v877
        %v897 = vsub.f32 %v808, %v877
        %v898 = vsub.f32 %v811, %v877
        %v899 = vsub.f32 %v813, %v877
        %v900 = vsub.f32 %v816, %v877
        %v901 = vsub.f32 %v818, %v877
        %v902 = vsub.f32 %v821, %v877
        %v903 = vsub.f32 %v823, %v877
        %v904 = vsub.f32 %v826, %v877
        %v905 = vsub.f32 %v828, %v877
        %v906 = vsub.f32 %v831, %v877
        %v907 = vsub.f32 %v833, %v877
        %v908 = vsub.f32 %v836, %v877
        %v909 = vsub.f32 %v838, %v877
        %v910 = vmul.f32 %v878, %v878
        %v911 = vmul.f32 %v879, %v879
        %v912 = vmul.f32 %v880, %v880
        %v913 = vmul.f32 %v881, %v881
        %v914 = vmul.f32 %v882, %v882
        %v915 = vmul.f32 %v883, %v883
        %v916 = vmul.f32 %v884, %v884
        %v917 = vmul.f32 %v885, %v885
        %v918 = vmul.f32 %v886, %v886
        %v919 = vmul.f32 %v887, %v887
        %v920 = vmul.f32 %v888, %v888
        %v921 = vmul.f32 %v889, %v889
        %v922 = vmul.f32 %v890, %v890
        %v923 = vmul.f32 %v891, %v891
        %v924 = vmul.f32 %v892, %v892
        %v925 = vmul.f32 %v893, %v893
        %v926 = vmul.f32 %v894, %v894
        %v927 = vmul.f32 %v895, %v895
        %v928 = vmul.f32 %v896, %v896
        %v929 = vmul.f32 %v897, %v897
        %v930 = vmul.f32 %v898, %v898
        %v931 = vmul.f32 %v899, %v899
        %v932 = vmul.f32 %v900, %v900
        %v933 = vmul.f32 %v901, %v901
        %v934 = vmul.f32 %v902, %v902
        %v935 = vmul.f32 %v903, %v903
        %v936 = vmul.f32 %v904, %v904
        %v937 = vmul.f32 %v905, %v905
        %v938 = vmul.f32 %v906, %v906
        %v939 = vmul.f32 %v907, %v907
        %v940 = vmul.f32 %v908, %v908
        %v941 = vmul.f32 %v909, %v909
        %v942 = vadd.f32 %v910, %v911
        %v943 = vadd.f32 %v942, %v912
        %v944 = vadd.f32 %v943, %v913
        %v945 = vadd.f32 %v944, %v914
        %v946 = vadd.f32 %v945, %v915
        %v947 = vadd.f32 %v946, %v916
        %v948 = vadd.f32 %v947, %v917
        %v949 = vadd.f32 %v948, %v918
        %v950 = vadd.f32 %v949, %v919
        %v951 = vadd.f32 %v950, %v920
        %v952 = vadd.f32 %v951, %v921
        %v953 = vadd.f32 %v952, %v922
        %v954 = vadd.f32 %v953, %v923
        %v955 = vadd.f32 %v954, %v924
        %v956 = vadd.f32 %v955, %v925
        %v957 = vadd.f32 %v956, %v926
        %v958 = vadd.f32 %v957, %v927
        %v959 = vadd.f32 %v958, %v928
        %v960 = vadd.f32 %v959, %v929
        %v961 = vadd.f32 %v960, %v930
        %v962 = vadd.f32 %v961, %v931
        %v963 = vadd.f32 %v962, %v932
        %v964 = vadd.f32 %v963, %v933
        %v965 = vadd.f32 %v964, %v934
        %v966 = vadd.f32 %v965, %v935
        %v967 = vadd.f32 %v966, %v936
        %v968 = vadd.f32 %v967, %v937
        %v969 = vadd.f32 %v968, %v938
        %v970 = vadd.f32 %v969, %v939
        %v971 = vadd.f32 %v970, %v940
        %v972 = vadd.f32 %v971, %v941
        %v973 = vrot.slane %v972, 4
        %v974 = vadd.f32 %v972, %v973
        %v975 = vrot.slane %v974, 2
        %v976 = vadd.f32 %v974, %v975
        %v977 = vrot.slane %v976, 1
        %v978 = vadd.f32 %v976, %v977
        %v979 = vmul.f32 %v978, 0.00390625
        %v980 = vadd.f32 %v979, 1e-05
        %v981 = vrsqrt.pop %v980
        %v982 = vmul.f32 %v981, %v980
        %v983 = vmul.f32 %v982, %v981
        %v984 = vmul.f32 0.5, %v983
        %v985 = vsub.f32 1.5, %v984
        %v986 = vmul.f32 %v981, %v985
        %vm987 = vweird.f32 %v980
        %vm988 = vweird.f32 %v981
        %vm989 = vmor %vm987, %vm988
        %v990 = vsel %vm989, %v981, %v986
        %v991 = vmul.f32 %v475, %v990
        %v993 = vperm.slane %v991, 0
        %v995 = vmul.f32 %v878, %v993
        %v996 = vmul.f32 %v879, %v993
        %v997 = vmul.f32 %v880, %v993
        %v998 = vmul.f32 %v881, %v993
        %v999 = vmul.f32 %v882, %v993
        %v1000 = vmul.f32 %v883, %v993
        %v1001 = vmul.f32 %v884, %v993
        %v1002 = vmul.f32 %v885, %v993
        %v1003 = vmul.f32 %v886, %v993
        %v1004 = vmul.f32 %v887, %v993
        %v1005 = vmul.f32 %v888, %v993
        %v1006 = vmul.f32 %v889, %v993
        %v1007 = vmul.f32 %v890, %v993
        %v1008 = vmul.f32 %v891, %v993
        %v1009 = vmul.f32 %v892, %v993
        %v1010 = vmul.f32 %v893, %v993
        %v1011 = vmul.f32 %v894, %v993
        %v1012 = vmul.f32 %v895, %v993
        %v1013 = vmul.f32 %v896, %v993
        %v1014 = vmul.f32 %v897, %v993
        %v1015 = vmul.f32 %v898, %v993
        %v1016 = vmul.f32 %v899, %v993
        %v1017 = vmul.f32 %v900, %v993
        %v1018 = vmul.f32 %v901, %v993
        %v1019 = vmul.f32 %v902, %v993
        %v1020 = vmul.f32 %v903, %v993
        %v1021 = vmul.f32 %v904, %v993
        %v1022 = vmul.f32 %v905, %v993
        %v1023 = vmul.f32 %v906, %v993
        %v1024 = vmul.f32 %v907, %v993
        %v1025 = vmul.f32 %v908, %v993
        %v1026 = vmul.f32 %v909, %v993
        %v1028 = vperm.slane %v476, 0
        %v1030 = vadd.f32 %v995, %v1028
        %v1031 = vadd.f32 %v996, %v1028
        %v1032 = vadd.f32 %v997, %v1028
        %v1033 = vadd.f32 %v998, %v1028
        %v1034 = vadd.f32 %v999, %v1028
        %v1035 = vadd.f32 %v1000, %v1028
        %v1036 = vadd.f32 %v1001, %v1028
        %v1037 = vadd.f32 %v1002, %v1028
        %v1038 = vadd.f32 %v1003, %v1028
        %v1039 = vadd.f32 %v1004, %v1028
        %v1040 = vadd.f32 %v1005, %v1028
        %v1041 = vadd.f32 %v1006, %v1028
        %v1042 = vadd.f32 %v1007, %v1028
        %v1043 = vadd.f32 %v1008, %v1028
        %v1044 = vadd.f32 %v1009, %v1028
        %v1045 = vadd.f32 %v1010, %v1028
        %v1046 = vadd.f32 %v1011, %v1028
        %v1047 = vadd.f32 %v1012, %v1028
        %v1048 = vadd.f32 %v1013, %v1028
        %v1049 = vadd.f32 %v1014, %v1028
        %v1050 = vadd.f32 %v1015, %v1028
        %v1051 = vadd.f32 %v1016, %v1028
        %v1052 = vadd.f32 %v1017, %v1028
        %v1053 = vadd.f32 %v1018, %v1028
        %v1054 = vadd.f32 %v1019, %v1028
        %v1055 = vadd.f32 %v1020, %v1028
        %v1056 = vadd.f32 %v1021, %v1028
        %v1057 = vadd.f32 %v1022, %v1028
        %v1058 = vadd.f32 %v1023, %v1028
        %v1059 = vadd.f32 %v1024, %v1028
        %v1060 = vadd.f32 %v1025, %v1028
        %v1061 = vadd.f32 %v1026, %v1028
        %v1062 = vmax.f32 %v1030, 0.0
        %v1063 = vmax.f32 %v1031, 0.0
        %v1064 = vmax.f32 %v1032, 0.0
        %v1065 = vmax.f32 %v1033, 0.0
        %v1066 = vmax.f32 %v1034, 0.0
        %v1067 = vmax.f32 %v1035, 0.0
        %v1068 = vmax.f32 %v1036, 0.0
        %v1069 = vmax.f32 %v1037, 0.0
        %v1070 = vmax.f32 %v1038, 0.0
        %v1071 = vmax.f32 %v1039, 0.0
        %v1072 = vmax.f32 %v1040, 0.0
        %v1073 = vmax.f32 %v1041, 0.0
        %v1074 = vmax.f32 %v1042, 0.0
        %v1075 = vmax.f32 %v1043, 0.0
        %v1076 = vmax.f32 %v1044, 0.0
        %v1077 = vmax.f32 %v1045, 0.0
        %v1078 = vmax.f32 %v1046, 0.0
        %v1079 = vmax.f32 %v1047, 0.0
        %v1080 = vmax.f32 %v1048, 0.0
        %v1081 = vmax.f32 %v1049, 0.0
        %v1082 = vmax.f32 %v1050, 0.0
        %v1083 = vmax.f32 %v1051, 0.0
        %v1084 = vmax.f32 %v1052, 0.0
        %v1085 = vmax.f32 %v1053, 0.0
        %v1086 = vmax.f32 %v1054, 0.0
        %v1087 = vmax.f32 %v1055, 0.0
        %v1088 = vmax.f32 %v1056, 0.0
        %v1089 = vmax.f32 %v1057, 0.0
        %v1090 = vmax.f32 %v1058, 0.0
        %v1091 = vmax.f32 %v1059, 0.0
        %v1092 = vmax.f32 %v1060, 0.0
        %v1093 = vmax.f32 %v1061, 0.0
        %v1094 = vpack.c.bf16 %v1063, %v1062
        %v1095 = vpack.c.bf16 %v1065, %v1064
        %v1096 = vpack.c.bf16 %v1067, %v1066
        %v1097 = vpack.c.bf16 %v1069, %v1068
        %v1098 = vpack.c.bf16 %v1071, %v1070
        %v1099 = vpack.c.bf16 %v1073, %v1072
        %v1100 = vpack.c.bf16 %v1075, %v1074
        %v1101 = vpack.c.bf16 %v1077, %v1076
        %v1102 = vpack.c.bf16 %v1079, %v1078
        %v1103 = vpack.c.bf16 %v1081, %v1080
        %v1104 = vpack.c.bf16 %v1083, %v1082
        %v1105 = vpack.c.bf16 %v1085, %v1084
        %v1106 = vpack.c.bf16 %v1087, %v1086
        %v1107 = vpack.c.bf16 %v1089, %v1088
        %v1108 = vpack.c.bf16 %v1091, %v1090
        %v1109 = vpack.c.bf16 %v1093, %v1092
        %v1110 = vld [vmem:[#allocation8] sm:$0xf]
        %v1111 = vld [vmem:[#allocation8 + $0x4] sm:$0xf]
        %v1112 = vld [vmem:[#allocation8 + $0x8] sm:$0xf]
        %v1113 = vld [vmem:[#allocation8 + $0xc] sm:$0xf]
        %v1114 = vld [vmem:[#allocation8 + $0x10] sm:$0xf]
        %v1115 = vld [vmem:[#allocation8 + $0x14] sm:$0xf]
        %v1116 = vld [vmem:[#allocation8 + $0x18] sm:$0xf]
        %v1117 = vld [vmem:[#allocation8 + $0x1c] sm:$0xf]
        %v1118 = vld [vmem:[#allocation8 + $0x20] sm:$0xf]
        %v1119 = vld [vmem:[#allocation8 + $0x24] sm:$0xf]
        %v1120 = vld [vmem:[#allocation8 + $0x28] sm:$0xf]
        %v1121 = vld [vmem:[#allocation8 + $0x2c] sm:$0xf]
        %v1122 = vld [vmem:[#allocation8 + $0x30] sm:$0xf]
        %v1123 = vld [vmem:[#allocation8 + $0x34] sm:$0xf]
        %v1124 = vld [vmem:[#allocation8 + $0x38] sm:$0xf]
        %v1125 = vld [vmem:[#allocation8 + $0x3c] sm:$0xf]
        %v1142 = vunpack.c.l.b16 %v1110
        %v1143 = vunpack.c.l.b16 %v1111
        %v1144 = vunpack.c.l.b16 %v1112
        %v1145 = vunpack.c.l.b16 %v1113
        %v1146 = vunpack.c.l.b16 %v1114
        %v1147 = vunpack.c.l.b16 %v1115
        %v1148 = vunpack.c.l.b16 %v1116
        %v1149 = vunpack.c.l.b16 %v1117
        %v1150 = vunpack.c.l.b16 %v1118
        %v1151 = vunpack.c.l.b16 %v1119
        %v1152 = vunpack.c.l.b16 %v1120
        %v1153 = vunpack.c.l.b16 %v1121
        %v1154 = vunpack.c.l.b16 %v1122
        %v1155 = vunpack.c.l.b16 %v1123
        %v1156 = vunpack.c.l.b16 %v1124
        %v1157 = vunpack.c.l.b16 %v1125
        %v1158 = vpack.c.b16 %v1143, %v1142
        %v1159 = vpack.c.b16 %v1145, %v1144
        %v1160 = vpack.c.b16 %v1147, %v1146
        %v1161 = vpack.c.b16 %v1149, %v1148
        %v1162 = vpack.c.b16 %v1151, %v1150
        %v1163 = vpack.c.b16 %v1153, %v1152
        %v1164 = vpack.c.b16 %v1155, %v1154
        %v1165 = vpack.c.b16 %v1157, %v1156
        %1174 = vmatpush.bf16.msra.mxu0 %v1165
        %1175 = vmatpush.bf16.msra.mxu0 %v1164
        %1176 = vmatpush.bf16.msra.mxu0 %v1163
        %1177 = vmatpush.bf16.msra.mxu0 %v1162
        %1178 = vmatpush.bf16.msra.mxu0 %v1161
        %1179 = vmatpush.bf16.msra.mxu0 %v1160
        %1180 = vmatpush.bf16.msra.mxu0 %v1159
        %1181 = vmatpush.bf16.msra.mxu0 %v1158
        %1182 = vmatmul.bf16.gmra.mxu0 %v1094
        %v1183 = vpop.f32.mrf.mxu0
        %v1184 = vadd.f32 0.0, %v1183
        %v1185 = vpop.f32.mrf.mxu0
        %v1186 = vadd.f32 0.0, %v1185
        %1187 = vmatmul.bf16.gmra.mxu0 %v1095
        %v1188 = vpop.f32.mrf.mxu0
        %v1189 = vadd.f32 0.0, %v1188
        %v1190 = vpop.f32.mrf.mxu0
        %v1191 = vadd.f32 0.0, %v1190
        %1192 = vmatmul.bf16.gmra.mxu0 %v1096
        %v1193 = vpop.f32.mrf.mxu0
        %v1194 = vadd.f32 0.0, %v1193
        %v1195 = vpop.f32.mrf.mxu0
        %v1196 = vadd.f32 0.0, %v1195
        %1197 = vmatmul.bf16.gmra.mxu0 %v1097
        %v1198 = vpop.f32.mrf.mxu0
        %v1199 = vadd.f32 0.0, %v1198
        %v1200 = vpop.f32.mrf.mxu0
        %v1201 = vadd.f32 0.0, %v1200
        %1202 = vmatmul.bf16.gmra.mxu0 %v1098
        %v1203 = vpop.f32.mrf.mxu0
        %v1204 = vadd.f32 0.0, %v1203
        %v1205 = vpop.f32.mrf.mxu0
        %v1206 = vadd.f32 0.0, %v1205
        %1207 = vmatmul.bf16.gmra.mxu0 %v1099
        %v1208 = vpop.f32.mrf.mxu0
        %v1209 = vadd.f32 0.0, %v1208
        %v1210 = vpop.f32.mrf.mxu0
        %v1211 = vadd.f32 0.0, %v1210
        %1212 = vmatmul.bf16.gmra.mxu0 %v1100
        %v1213 = vpop.f32.mrf.mxu0
        %v1214 = vadd.f32 0.0, %v1213
        %v1215 = vpop.f32.mrf.mxu0
        %v1216 = vadd.f32 0.0, %v1215
        %1217 = vmatmul.bf16.gmra.mxu0 %v1101
        %v1218 = vpop.f32.mrf.mxu0
        %v1219 = vadd.f32 0.0, %v1218
        %v1220 = vpop.f32.mrf.mxu0
        %v1221 = vadd.f32 0.0, %v1220
        %1222 = vmatmul.bf16.gmra.mxu0 %v1102
        %v1223 = vpop.f32.mrf.mxu0
        %v1224 = vadd.f32 0.0, %v1223
        %v1225 = vpop.f32.mrf.mxu0
        %v1226 = vadd.f32 0.0, %v1225
        %1227 = vmatmul.bf16.gmra.mxu0 %v1103
        %v1228 = vpop.f32.mrf.mxu0
        %v1229 = vadd.f32 0.0, %v1228
        %v1230 = vpop.f32.mrf.mxu0
        %v1231 = vadd.f32 0.0, %v1230
        %1232 = vmatmul.bf16.gmra.mxu0 %v1104
        %v1233 = vpop.f32.mrf.mxu0
        %v1234 = vadd.f32 0.0, %v1233
        %v1235 = vpop.f32.mrf.mxu0
        %v1236 = vadd.f32 0.0, %v1235
        %1237 = vmatmul.bf16.gmra.mxu0 %v1105
        %v1238 = vpop.f32.mrf.mxu0
        %v1239 = vadd.f32 0.0, %v1238
        %v1240 = vpop.f32.mrf.mxu0
        %v1241 = vadd.f32 0.0, %v1240
        %1242 = vmatmul.bf16.gmra.mxu0 %v1106
        %v1243 = vpop.f32.mrf.mxu0
        %v1244 = vadd.f32 0.0, %v1243
        %v1245 = vpop.f32.mrf.mxu0
        %v1246 = vadd.f32 0.0, %v1245
        %1247 = vmatmul.bf16.gmra.mxu0 %v1107
        %v1248 = vpop.f32.mrf.mxu0
        %v1249 = vadd.f32 0.0, %v1248
        %v1250 = vpop.f32.mrf.mxu0
        %v1251 = vadd.f32 0.0, %v1250
        %1252 = vmatmul.bf16.gmra.mxu0 %v1108
        %v1253 = vpop.f32.mrf.mxu0
        %v1254 = vadd.f32 0.0, %v1253
        %v1255 = vpop.f32.mrf.mxu0
        %v1256 = vadd.f32 0.0, %v1255
        %1257 = vmatmul.bf16.gmra.mxu0 %v1109
        %v1258 = vpop.f32.mrf.mxu0
        %v1259 = vadd.f32 0.0, %v1258
        %v1260 = vpop.f32.mrf.mxu0
        %v1261 = vadd.f32 0.0, %v1260
        %1262 = vdwg.mxu0
        %v1263 = vpack.c.bf16 %v1186, %v1184
        %v1264 = vpack.c.bf16 %v1191, %v1189
        %v1265 = vpack.c.bf16 %v1196, %v1194
        %v1266 = vpack.c.bf16 %v1201, %v1199
        %v1267 = vpack.c.bf16 %v1206, %v1204
        %v1268 = vpack.c.bf16 %v1211, %v1209
        %v1269 = vpack.c.bf16 %v1216, %v1214
        %v1270 = vpack.c.bf16 %v1221, %v1219
        %v1271 = vpack.c.bf16 %v1226, %v1224
        %v1272 = vpack.c.bf16 %v1231, %v1229
        %v1273 = vpack.c.bf16 %v1236, %v1234
        %v1274 = vpack.c.bf16 %v1241, %v1239
        %v1275 = vpack.c.bf16 %v1246, %v1244
        %v1276 = vpack.c.bf16 %v1251, %v1249
        %v1277 = vpack.c.bf16 %v1256, %v1254
        %v1278 = vpack.c.bf16 %v1261, %v1259
        %1279 = vmatpush.bf16.msra.mxu0 %v1270
        %1280 = vmatpush.bf16.msra.mxu0 %v1269
        %1281 = vmatpush.bf16.msra.mxu0 %v1268
        %1282 = vmatpush.bf16.msra.mxu0 %v1267
        %1283 = vmatpush.bf16.msra.mxu0 %v1266
        %1284 = vmatpush.bf16.msra.mxu0 %v1265
        %1285 = vmatpush.bf16.msra.mxu0 %v1264
        %1286 = vmatpush.bf16.msra.mxu0 %v1263
        %1287 = vmatmul.bf16.gmra.mxu0 %v443
        %v1288 = vpop.f32.mrf.mxu0
        %v1289 = vadd.f32 0.0, %v1288
        %v1290 = vpop.f32.mrf.mxu0
        %v1291 = vadd.f32 0.0, %v1290
        %1292 = vmatmul.bf16.gmra.mxu0 %v445
        %v1293 = vpop.f32.mrf.mxu0
        %v1294 = vadd.f32 0.0, %v1293
        %v1295 = vpop.f32.mrf.mxu0
        %v1296 = vadd.f32 0.0, %v1295
        %1297 = vmatmul.bf16.gmra.mxu0 %v447
        %v1298 = vpop.f32.mrf.mxu0
        %v1299 = vadd.f32 0.0, %v1298
        %v1300 = vpop.f32.mrf.mxu0
        %v1301 = vadd.f32 0.0, %v1300
        %1302 = vmatmul.bf16.gmra.mxu0 %v449
        %v1303 = vpop.f32.mrf.mxu0
        %v1304 = vadd.f32 0.0, %v1303
        %v1305 = vpop.f32.mrf.mxu0
        %v1306 = vadd.f32 0.0, %v1305
        %1307 = vmatmul.bf16.gmra.mxu0 %v451
        %v1308 = vpop.f32.mrf.mxu0
        %v1309 = vadd.f32 0.0, %v1308
        %v1310 = vpop.f32.mrf.mxu0
        %v1311 = vadd.f32 0.0, %v1310
        %1312 = vmatmul.bf16.gmra.mxu0 %v453
        %v1313 = vpop.f32.mrf.mxu0
        %v1314 = vadd.f32 0.0, %v1313
        %v1315 = vpop.f32.mrf.mxu0
        %v1316 = vadd.f32 0.0, %v1315
        %1317 = vmatmul.bf16.gmra.mxu0 %v455
        %v1318 = vpop.f32.mrf.mxu0
        %v1319 = vadd.f32 0.0, %v1318
        %v1320 = vpop.f32.mrf.mxu0
        %v1321 = vadd.f32 0.0, %v1320
        %1322 = vmatmul.bf16.gmra.mxu0 %v457
        %v1323 = vpop.f32.mrf.mxu0
        %v1324 = vadd.f32 0.0, %v1323
        %v1325 = vpop.f32.mrf.mxu0
        %v1326 = vadd.f32 0.0, %v1325
        %1327 = vmatmul.bf16.gmra.mxu0 %v459
        %v1328 = vpop.f32.mrf.mxu0
        %v1329 = vadd.f32 0.0, %v1328
        %v1330 = vpop.f32.mrf.mxu0
        %v1331 = vadd.f32 0.0, %v1330
        %1332 = vmatmul.bf16.gmra.mxu0 %v461
        %v1333 = vpop.f32.mrf.mxu0
        %v1334 = vadd.f32 0.0, %v1333
        %v1335 = vpop.f32.mrf.mxu0
        %v1336 = vadd.f32 0.0, %v1335
        %1337 = vmatmul.bf16.gmra.mxu0 %v463
        %v1338 = vpop.f32.mrf.mxu0
        %v1339 = vadd.f32 0.0, %v1338
        %v1340 = vpop.f32.mrf.mxu0
        %v1341 = vadd.f32 0.0, %v1340
        %1342 = vmatmul.bf16.gmra.mxu0 %v465
        %v1343 = vpop.f32.mrf.mxu0
        %v1344 = vadd.f32 0.0, %v1343
        %v1345 = vpop.f32.mrf.mxu0
        %v1346 = vadd.f32 0.0, %v1345
        %1347 = vmatmul.bf16.gmra.mxu0 %v467
        %v1348 = vpop.f32.mrf.mxu0
        %v1349 = vadd.f32 0.0, %v1348
        %v1350 = vpop.f32.mrf.mxu0
        %v1351 = vadd.f32 0.0, %v1350
        %1352 = vmatmul.bf16.gmra.mxu0 %v469
        %v1353 = vpop.f32.mrf.mxu0
        %v1354 = vadd.f32 0.0, %v1353
        %v1355 = vpop.f32.mrf.mxu0
        %v1356 = vadd.f32 0.0, %v1355
        %1357 = vmatmul.bf16.gmra.mxu0 %v471
        %v1358 = vpop.f32.mrf.mxu0
        %v1359 = vadd.f32 0.0, %v1358
        %v1360 = vpop.f32.mrf.mxu0
        %v1361 = vadd.f32 0.0, %v1360
        %1362 = vmatmul.bf16.gmra.mxu0 %v473
        %v1363 = vpop.f32.mrf.mxu0
        %v1364 = vadd.f32 0.0, %v1363
        %v1365 = vpop.f32.mrf.mxu0
        %v1366 = vadd.f32 0.0, %v1365
        %1367 = vdwg.mxu0
        %1368 = vmatpush.bf16.msra.mxu0 %v1278
        %1369 = vmatpush.bf16.msra.mxu0 %v1277
        %1370 = vmatpush.bf16.msra.mxu0 %v1276
        %1371 = vmatpush.bf16.msra.mxu0 %v1275
        %1372 = vmatpush.bf16.msra.mxu0 %v1274
        %1373 = vmatpush.bf16.msra.mxu0 %v1273
        %1374 = vmatpush.bf16.msra.mxu0 %v1272
        %1375 = vmatpush.bf16.msra.mxu0 %v1271
        %1376 = vmatmul.bf16.gmra.mxu0 %v444
        %v1377 = vpop.f32.mrf.mxu0
        %v1378 = vadd.f32 %v1289, %v1377
        %v1379 = vpop.f32.mrf.mxu0
        %v1380 = vadd.f32 %v1291, %v1379
        %1381 = vmatmul.bf16.gmra.mxu0 %v446
        %v1382 = vpop.f32.mrf.mxu0
        %v1383 = vadd.f32 %v1294, %v1382
        %v1384 = vpop.f32.mrf.mxu0
        %v1385 = vadd.f32 %v1296, %v1384
        %1386 = vmatmul.bf16.gmra.mxu0 %v448
        %v1387 = vpop.f32.mrf.mxu0
        %v1388 = vadd.f32 %v1299, %v1387
        %v1389 = vpop.f32.mrf.mxu0
        %v1390 = vadd.f32 %v1301, %v1389
        %1391 = vmatmul.bf16.gmra.mxu0 %v450
        %v1392 = vpop.f32.mrf.mxu0
        %v1393 = vadd.f32 %v1304, %v1392
        %v1394 = vpop.f32.mrf.mxu0
        %v1395 = vadd.f32 %v1306, %v1394
        %1396 = vmatmul.bf16.gmra.mxu0 %v452
        %v1397 = vpop.f32.mrf.mxu0
        %v1398 = vadd.f32 %v1309, %v1397
        %v1399 = vpop.f32.mrf.mxu0
        %v1400 = vadd.f32 %v1311, %v1399
        %1401 = vmatmul.bf16.gmra.mxu0 %v454
        %v1402 = vpop.f32.mrf.mxu0
        %v1403 = vadd.f32 %v1314, %v1402
        %v1404 = vpop.f32.mrf.mxu0
        %v1405 = vadd.f32 %v1316, %v1404
        %1406 = vmatmul.bf16.gmra.mxu0 %v456
        %v1407 = vpop.f32.mrf.mxu0
        %v1408 = vadd.f32 %v1319, %v1407
        %v1409 = vpop.f32.mrf.mxu0
        %v1410 = vadd.f32 %v1321, %v1409
        %1411 = vmatmul.bf16.gmra.mxu0 %v458
        %v1412 = vpop.f32.mrf.mxu0
        %v1413 = vadd.f32 %v1324, %v1412
        %v1414 = vpop.f32.mrf.mxu0
        %v1415 = vadd.f32 %v1326, %v1414
        %1416 = vmatmul.bf16.gmra.mxu0 %v460
        %v1417 = vpop.f32.mrf.mxu0
        %v1418 = vadd.f32 %v1329, %v1417
        %v1419 = vpop.f32.mrf.mxu0
        %v1420 = vadd.f32 %v1331, %v1419
        %1421 = vmatmul.bf16.gmra.mxu0 %v462
        %v1422 = vpop.f32.mrf.mxu0
        %v1423 = vadd.f32 %v1334, %v1422
        %v1424 = vpop.f32.mrf.mxu0
        %v1425 = vadd.f32 %v1336, %v1424
        %1426 = vmatmul.bf16.gmra.mxu0 %v464
        %v1427 = vpop.f32.mrf.mxu0
        %v1428 = vadd.f32 %v1339, %v1427
        %v1429 = vpop.f32.mrf.mxu0
        %v1430 = vadd.f32 %v1341, %v1429
        %1431 = vmatmul.bf16.gmra.mxu0 %v466
        %v1432 = vpop.f32.mrf.mxu0
        %v1433 = vadd.f32 %v1344, %v1432
        %v1434 = vpop.f32.mrf.mxu0
        %v1435 = vadd.f32 %v1346, %v1434
        %1436 = vmatmul.bf16.gmra.mxu0 %v468
        %v1437 = vpop.f32.mrf.mxu0
        %v1438 = vadd.f32 %v1349, %v1437
        %v1439 = vpop.f32.mrf.mxu0
        %v1440 = vadd.f32 %v1351, %v1439
        %1441 = vmatmul.bf16.gmra.mxu0 %v470
        %v1442 = vpop.f32.mrf.mxu0
        %v1443 = vadd.f32 %v1354, %v1442
        %v1444 = vpop.f32.mrf.mxu0
        %v1445 = vadd.f32 %v1356, %v1444
        %1446 = vmatmul.bf16.gmra.mxu0 %v472
        %v1447 = vpop.f32.mrf.mxu0
        %v1448 = vadd.f32 %v1359, %v1447
        %v1449 = vpop.f32.mrf.mxu0
        %v1450 = vadd.f32 %v1361, %v1449
        %1451 = vmatmul.bf16.gmra.mxu0 %v474
        %v1452 = vpop.f32.mrf.mxu0
        %v1453 = vadd.f32 %v1364, %v1452
        %v1454 = vpop.f32.mrf.mxu0
        %v1455 = vadd.f32 %v1366, %v1454
        %1456 = vdwg.mxu0
        %v1457 = vadd.f32 %v1378, %v1380
        %v1458 = vadd.f32 %v1457, %v1383
        %v1459 = vadd.f32 %v1458, %v1385
        %v1460 = vadd.f32 %v1459, %v1388
        %v1461 = vadd.f32 %v1460, %v1390
        %v1462 = vadd.f32 %v1461, %v1393
        %v1463 = vadd.f32 %v1462, %v1395
        %v1464 = vadd.f32 %v1463, %v1398
        %v1465 = vadd.f32 %v1464, %v1400
        %v1466 = vadd.f32 %v1465, %v1403
        %v1467 = vadd.f32 %v1466, %v1405
        %v1468 = vadd.f32 %v1467, %v1408
        %v1469 = vadd.f32 %v1468, %v1410
        %v1470 = vadd.f32 %v1469, %v1413
        %v1471 = vadd.f32 %v1470, %v1415
        %v1472 = vadd.f32 %v1471, %v1418
        %v1473 = vadd.f32 %v1472, %v1420
        %v1474 = vadd.f32 %v1473, %v1423
        %v1475 = vadd.f32 %v1474, %v1425
        %v1476 = vadd.f32 %v1475, %v1428
        %v1477 = vadd.f32 %v1476, %v1430
        %v1478 = vadd.f32 %v1477, %v1433
        %v1479 = vadd.f32 %v1478, %v1435
        %v1480 = vadd.f32 %v1479, %v1438
        %v1481 = vadd.f32 %v1480, %v1440
        %v1482 = vadd.f32 %v1481, %v1443
        %v1483 = vadd.f32 %v1482, %v1445
        %v1484 = vadd.f32 %v1483, %v1448
        %v1485 = vadd.f32 %v1484, %v1450
        %v1486 = vadd.f32 %v1485, %v1453
        %v1487 = vadd.f32 %v1486, %v1455
        %v1488 = vrot.slane %v1487, 4
        %v1489 = vadd.f32 %v1487, %v1488
        %v1490 = vrot.slane %v1489, 2
        %v1491 = vadd.f32 %v1489, %v1490
        %v1492 = vrot.slane %v1491, 1
        %v1493 = vadd.f32 %v1491, %v1492
        %v1494 = vmul.f32 %v1493, 0.00390625
        %v1495 = vsub.f32 %v1378, %v1494
        %v1496 = vsub.f32 %v1380, %v1494
        %v1497 = vsub.f32 %v1383, %v1494
        %v1498 = vsub.f32 %v1385, %v1494
        %v1499 = vsub.f32 %v1388, %v1494
        %v1500 = vsub.f32 %v1390, %v1494
        %v1501 = vsub.f32 %v1393, %v1494
        %v1502 = vsub.f32 %v1395, %v1494
        %v1503 = vsub.f32 %v1398, %v1494
        %v1504 = vsub.f32 %v1400, %v1494
        %v1505 = vsub.f32 %v1403, %v1494
        %v1506 = vsub.f32 %v1405, %v1494
        %v1507 = vsub.f32 %v1408, %v1494
        %v1508 = vsub.f32 %v1410, %v1494
        %v1509 = vsub.f32 %v1413, %v1494
        %v1510 = vsub.f32 %v1415, %v1494
        %v1511 = vsub.f32 %v1418, %v1494
        %v1512 = vsub.f32 %v1420, %v1494
        %v1513 = vsub.f32 %v1423, %v1494
        %v1514 = vsub.f32 %v1425, %v1494
        %v1515 = vsub.f32 %v1428, %v1494
        %v1516 = vsub.f32 %v1430, %v1494
        %v1517 = vsub.f32 %v1433, %v1494
        %v1518 = vsub.f32 %v1435, %v1494
        %v1519 = vsub.f32 %v1438, %v1494
        %v1520 = vsub.f32 %v1440, %v1494
        %v1521 = vsub.f32 %v1443, %v1494
        %v1522 = vsub.f32 %v1445, %v1494
        %v1523 = vsub.f32 %v1448, %v1494
        %v1524 = vsub.f32 %v1450, %v1494
        %v1525 = vsub.f32 %v1453, %v1494
        %v1526 = vsub.f32 %v1455, %v1494
        %v1527 = vmul.f32 %v1495, %v1495
        %v1528 = vmul.f32 %v1496, %v1496
        %v1529 = vmul.f32 %v1497, %v1497
        %v1530 = vmul.f32 %v1498, %v1498
        %v1531 = vmul.f32 %v1499, %v1499
        %v1532 = vmul.f32 %v1500, %v1500
        %v1533 = vmul.f32 %v1501, %v1501
        %v1534 = vmul.f32 %v1502, %v1502
        %v1535 = vmul.f32 %v1503, %v1503
        %v1536 = vmul.f32 %v1504, %v1504
        %v1537 = vmul.f32 %v1505, %v1505
        %v1538 = vmul.f32 %v1506, %v1506
        %v1539 = vmul.f32 %v1507, %v1507
        %v1540 = vmul.f32 %v1508, %v1508
        %v1541 = vmul.f32 %v1509, %v1509
        %v1542 = vmul.f32 %v1510, %v1510
        %v1543 = vmul.f32 %v1511, %v1511
        %v1544 = vmul.f32 %v1512, %v1512
        %v1545 = vmul.f32 %v1513, %v1513
        %v1546 = vmul.f32 %v1514, %v1514
        %v1547 = vmul.f32 %v1515, %v1515
        %v1548 = vmul.f32 %v1516, %v1516
        %v1549 = vmul.f32 %v1517, %v1517
        %v1550 = vmul.f32 %v1518, %v1518
        %v1551 = vmul.f32 %v1519, %v1519
        %v1552 = vmul.f32 %v1520, %v1520
        %v1553 = vmul.f32 %v1521, %v1521
        %v1554 = vmul.f32 %v1522, %v1522
        %v1555 = vmul.f32 %v1523, %v1523
        %v1556 = vmul.f32 %v1524, %v1524
        %v1557 = vmul.f32 %v1525, %v1525
        %v1558 = vmul.f32 %v1526, %v1526
        %v1559 = vadd.f32 %v1527, %v1528
        %v1560 = vadd.f32 %v1559, %v1529
        %v1561 = vadd.f32 %v1560, %v1530
        %v1562 = vadd.f32 %v1561, %v1531
        %v1563 = vadd.f32 %v1562, %v1532
        %v1564 = vadd.f32 %v1563, %v1533
        %v1565 = vadd.f32 %v1564, %v1534
        %v1566 = vadd.f32 %v1565, %v1535
        %v1567 = vadd.f32 %v1566, %v1536
        %v1568 = vadd.f32 %v1567, %v1537
        %v1569 = vadd.f32 %v1568, %v1538
        %v1570 = vadd.f32 %v1569, %v1539
        %v1571 = vadd.f32 %v1570, %v1540
        %v1572 = vadd.f32 %v1571, %v1541
        %v1573 = vadd.f32 %v1572, %v1542
        %v1574 = vadd.f32 %v1573, %v1543
        %v1575 = vadd.f32 %v1574, %v1544
        %v1576 = vadd.f32 %v1575, %v1545
        %v1577 = vadd.f32 %v1576, %v1546
        %v1578 = vadd.f32 %v1577, %v1547
        %v1579 = vadd.f32 %v1578, %v1548
        %v1580 = vadd.f32 %v1579, %v1549
        %v1581 = vadd.f32 %v1580, %v1550
        %v1582 = vadd.f32 %v1581, %v1551
        %v1583 = vadd.f32 %v1582, %v1552
        %v1584 = vadd.f32 %v1583, %v1553
        %v1585 = vadd.f32 %v1584, %v1554
        %v1586 = vadd.f32 %v1585, %v1555
        %v1587 = vadd.f32 %v1586, %v1556
        %v1588 = vadd.f32 %v1587, %v1557
        %v1589 = vadd.f32 %v1588, %v1558
        %v1590 = vrot.slane %v1589, 4
        %v1591 = vadd.f32 %v1589, %v1590
        %v1592 = vrot.slane %v1591, 2
        %v1593 = vadd.f32 %v1591, %v1592
        %v1594 = vrot.slane %v1593, 1
        %v1595 = vadd.f32 %v1593, %v1594
        %v1596 = vmul.f32 %v1595, 0.00390625
        %v1597 = vadd.f32 %v1596, 1e-05
        %v1598 = vrsqrt.pop %v1597
        %v1599 = vmul.f32 %v1598, %v1597
        %v1600 = vmul.f32 %v1599, %v1598
        %v1601 = vmul.f32 0.5, %v1600
        %v1602 = vsub.f32 1.5, %v1601
        %v1603 = vmul.f32 %v1598, %v1602
        %vm1604 = vweird.f32 %v1597
        %vm1605 = vweird.f32 %v1598
        %vm1606 = vmor %vm1604, %vm1605
        %v1607 = vsel %vm1606, %v1598, %v1603
        %v1608 = vmul.f32 %v475, %v1607
        %v1610 = vperm.slane %v1608, 0
        %v1612 = vmul.f32 %v1495, %v1610
        %v1613 = vmul.f32 %v1496, %v1610
        %v1614 = vmul.f32 %v1497, %v1610
        %v1615 = vmul.f32 %v1498, %v1610
        %v1616 = vmul.f32 %v1499, %v1610
        %v1617 = vmul.f32 %v1500, %v1610
        %v1618 = vmul.f32 %v1501, %v1610
        %v1619 = vmul.f32 %v1502, %v1610
        %v1620 = vmul.f32 %v1503, %v1610
        %v1621 = vmul.f32 %v1504, %v1610
        %v1622 = vmul.f32 %v1505, %v1610
        %v1623 = vmul.f32 %v1506, %v1610
        %v1624 = vmul.f32 %v1507, %v1610
        %v1625 = vmul.f32 %v1508, %v1610
        %v1626 = vmul.f32 %v1509, %v1610
        %v1627 = vmul.f32 %v1510, %v1610
        %v1628 = vmul.f32 %v1511, %v1610
        %v1629 = vmul.f32 %v1512, %v1610
        %v1630 = vmul.f32 %v1513, %v1610
        %v1631 = vmul.f32 %v1514, %v1610
        %v1632 = vmul.f32 %v1515, %v1610
        %v1633 = vmul.f32 %v1516, %v1610
        %v1634 = vmul.f32 %v1517, %v1610
        %v1635 = vmul.f32 %v1518, %v1610
        %v1636 = vmul.f32 %v1519, %v1610
        %v1637 = vmul.f32 %v1520, %v1610
        %v1638 = vmul.f32 %v1521, %v1610
        %v1639 = vmul.f32 %v1522, %v1610
        %v1640 = vmul.f32 %v1523, %v1610
        %v1641 = vmul.f32 %v1524, %v1610
        %v1642 = vmul.f32 %v1525, %v1610
        %v1643 = vmul.f32 %v1526, %v1610
        %v1644 = vadd.f32 %v1612, %v1028
        %v1645 = vadd.f32 %v1613, %v1028
        %v1646 = vadd.f32 %v1614, %v1028
        %v1647 = vadd.f32 %v1615, %v1028
        %v1648 = vadd.f32 %v1616, %v1028
        %v1649 = vadd.f32 %v1617, %v1028
        %v1650 = vadd.f32 %v1618, %v1028
        %v1651 = vadd.f32 %v1619, %v1028
        %v1652 = vadd.f32 %v1620, %v1028
        %v1653 = vadd.f32 %v1621, %v1028
        %v1654 = vadd.f32 %v1622, %v1028
        %v1655 = vadd.f32 %v1623, %v1028
        %v1656 = vadd.f32 %v1624, %v1028
        %v1657 = vadd.f32 %v1625, %v1028
        %v1658 = vadd.f32 %v1626, %v1028
        %v1659 = vadd.f32 %v1627, %v1028
        %v1660 = vadd.f32 %v1628, %v1028
        %v1661 = vadd.f32 %v1629, %v1028
        %v1662 = vadd.f32 %v1630, %v1028
        %v1663 = vadd.f32 %v1631, %v1028
        %v1664 = vadd.f32 %v1632, %v1028
        %v1665 = vadd.f32 %v1633, %v1028
        %v1666 = vadd.f32 %v1634, %v1028
        %v1667 = vadd.f32 %v1635, %v1028
        %v1668 = vadd.f32 %v1636, %v1028
        %v1669 = vadd.f32 %v1637, %v1028
        %v1670 = vadd.f32 %v1638, %v1028
        %v1671 = vadd.f32 %v1639, %v1028
        %v1672 = vadd.f32 %v1640, %v1028
        %v1673 = vadd.f32 %v1641, %v1028
        %v1674 = vadd.f32 %v1642, %v1028
        %v1675 = vadd.f32 %v1643, %v1028
        %v1676 = vadd.f32 %v1644, %v347
        %v1677 = vadd.f32 %v1645, %v348
        %v1678 = vadd.f32 %v1646, %v349
        %v1679 = vadd.f32 %v1647, %v350
        %v1680 = vadd.f32 %v1648, %v351
        %v1681 = vadd.f32 %v1649, %v352
        %v1682 = vadd.f32 %v1650, %v353
        %v1683 = vadd.f32 %v1651, %v354
        %v1684 = vadd.f32 %v1652, %v355
        %v1685 = vadd.f32 %v1653, %v356
        %v1686 = vadd.f32 %v1654, %v357
        %v1687 = vadd.f32 %v1655, %v358
        %v1688 = vadd.f32 %v1656, %v359
        %v1689 = vadd.f32 %v1657, %v360
        %v1690 = vadd.f32 %v1658, %v361
        %v1691 = vadd.f32 %v1659, %v362
        %v1692 = vadd.f32 %v1660, %v363
        %v1693 = vadd.f32 %v1661, %v364
        %v1694 = vadd.f32 %v1662, %v365
        %v1695 = vadd.f32 %v1663, %v366
        %v1696 = vadd.f32 %v1664, %v367
        %v1697 = vadd.f32 %v1665, %v368
        %v1698 = vadd.f32 %v1666, %v369
        %v1699 = vadd.f32 %v1667, %v370
        %v1700 = vadd.f32 %v1668, %v371
        %v1701 = vadd.f32 %v1669, %v372
        %v1702 = vadd.f32 %v1670, %v373
        %v1703 = vadd.f32 %v1671, %v374
        %v1704 = vadd.f32 %v1672, %v375
        %v1705 = vadd.f32 %v1673, %v376
        %v1706 = vadd.f32 %v1674, %v377
        %v1707 = vadd.f32 %v1675, %v378
        %v1708 = vmax.f32 %v1676, 0.0
        %v1709 = vmax.f32 %v1677, 0.0
        %v1710 = vmax.f32 %v1678, 0.0
        %v1711 = vmax.f32 %v1679, 0.0
        %v1712 = vmax.f32 %v1680, 0.0
        %v1713 = vmax.f32 %v1681, 0.0
        %v1714 = vmax.f32 %v1682, 0.0
        %v1715 = vmax.f32 %v1683, 0.0
        %v1716 = vmax.f32 %v1684, 0.0
        %v1717 = vmax.f32 %v1685, 0.0
        %v1718 = vmax.f32 %v1686, 0.0
        %v1719 = vmax.f32 %v1687, 0.0
        %v1720 = vmax.f32 %v1688, 0.0
        %v1721 = vmax.f32 %v1689, 0.0
        %v1722 = vmax.f32 %v1690, 0.0
        %v1723 = vmax.f32 %v1691, 0.0
        %v1724 = vmax.f32 %v1692, 0.0
        %v1725 = vmax.f32 %v1693, 0.0
        %v1726 = vmax.f32 %v1694, 0.0
        %v1727 = vmax.f32 %v1695, 0.0
        %v1728 = vmax.f32 %v1696, 0.0
        %v1729 = vmax.f32 %v1697, 0.0
        %v1730 = vmax.f32 %v1698, 0.0
        %v1731 = vmax.f32 %v1699, 0.0
        %v1732 = vmax.f32 %v1700, 0.0
        %v1733 = vmax.f32 %v1701, 0.0
        %v1734 = vmax.f32 %v1702, 0.0
        %v1735 = vmax.f32 %v1703, 0.0
        %v1736 = vmax.f32 %v1704, 0.0
        %v1737 = vmax.f32 %v1705, 0.0
        %v1738 = vmax.f32 %v1706, 0.0
        %v1739 = vmax.f32 %v1707, 0.0
        %1740 = vst [vmem:[%s346] sm:$0xff] %v1708
        %1741 = vst [vmem:[%s346 + $0x8] sm:$0xff] %v1709
        %1742 = vst [vmem:[%s346 + $0x10] sm:$0xff] %v1710
        %1743 = vst [vmem:[%s346 + $0x18] sm:$0xff] %v1711
        %1744 = vst [vmem:[%s346 + $0x20] sm:$0xff] %v1712
        %1745 = vst [vmem:[%s346 + $0x28] sm:$0xff] %v1713
        %1746 = vst [vmem:[%s346 + $0x30] sm:$0xff] %v1714
        %1747 = vst [vmem:[%s346 + $0x38] sm:$0xff] %v1715
        %1748 = vst [vmem:[%s346 + $0x40] sm:$0xff] %v1716
        %1749 = vst [vmem:[%s346 + $0x48] sm:$0xff] %v1717
        %1750 = vst [vmem:[%s346 + $0x50] sm:$0xff] %v1718
        %1751 = vst [vmem:[%s346 + $0x58] sm:$0xff] %v1719
        %1752 = vst [vmem:[%s346 + $0x60] sm:$0xff] %v1720
        %1753 = vst [vmem:[%s346 + $0x68] sm:$0xff] %v1721
        %1754 = vst [vmem:[%s346 + $0x70] sm:$0xff] %v1722
        %1755 = vst [vmem:[%s346 + $0x78] sm:$0xff] %v1723
        %1756 = vst [vmem:[%s346 + $0x80] sm:$0xff] %v1724
        %1757 = vst [vmem:[%s346 + $0x88] sm:$0xff] %v1725
        %1758 = vst [vmem:[%s346 + $0x90] sm:$0xff] %v1726
        %1759 = vst [vmem:[%s346 + $0x98] sm:$0xff] %v1727
        %1760 = vst [vmem:[%s346 + $0xa0] sm:$0xff] %v1728
        %1761 = vst [vmem:[%s346 + $0xa8] sm:$0xff] %v1729
        %1762 = vst [vmem:[%s346 + $0xb0] sm:$0xff] %v1730
        %1763 = vst [vmem:[%s346 + $0xb8] sm:$0xff] %v1731
        %1764 = vst [vmem:[%s346 + $0xc0] sm:$0xff] %v1732
        %1765 = vst [vmem:[%s346 + $0xc8] sm:$0xff] %v1733
        %1766 = vst [vmem:[%s346 + $0xd0] sm:$0xff] %v1734
        %1767 = vst [vmem:[%s346 + $0xd8] sm:$0xff] %v1735
        %1768 = vst [vmem:[%s346 + $0xe0] sm:$0xff] %v1736
        %1769 = vst [vmem:[%s346 + $0xe8] sm:$0xff] %v1737
        %1770 = vst [vmem:[%s346 + $0xf0] sm:$0xff] %v1738
        %1771 = vst [vmem:[%s346 + $0xf8] sm:$0xff] %v1739
        %s1772 = sand.u32 %s171, 1
        %s1773 = scalar_lea.sflag [#allocation4], %s1772
        %s1774 = sand.u32 %s171, 1
        %s1775 = smul.addr %s1774, 256
        %s1776 = scalar_lea.vmem [#allocation10], %s1775
        // Predicated region
        $region61: #{tpu_custom_call.1} parent=43 // pred_check
          %p1777 = pneg %p181
        $region62: #{tpu_custom_call.1} parent=43 // pred_check_branch
          %1779 = sbr.rel (%p1777) target = $region64
        $region63: #{tpu_custom_call.1} parent=43 // pred_region
          %1781 = vsyncadd %s1773, 0
          %s1782 = smul.addr %s27, 32
          %s1783 = smul.addr %s1782, 8
          %s1784 = scalar_lea.hbm %s6, %s1783
          %s1785 = sshll.u32 %s1776, 4
          %s1786 = int_to_ptr.vmem [resolvable:$true] %s1785
          %s1787 = sshll.u32 %s1784, 4
          %s1788 = int_to_ptr.hbm [resolvable:$true] %s1787
          %1793 = dma.vmem_to_hbm [thread:$0]  %s1786, 4096, %s1788, %s1773, 128, 128, 8
        $region64: #{tpu_custom_call.1} parent=43 // pred_fallthru
          _
      $region44: #{tpu_custom_call.1} parent=5 // pred_fallthru
        _
      %p1794 = scmp.le.s32.totalorder 2, %s22
      // Predicated region
      $region65: #{tpu_custom_call.1} parent=5 // pred_check
        %p1795 = pneg %p1794
      $region66: #{tpu_custom_call.1} parent=5 // pred_check_branch
        %1797 = sbr.rel (%p1795) target = $region68
      $region67: #{tpu_custom_call.1} parent=5 // pred_region
        %s1798 = ssub.s32 %s22, 2
        // Predicated region
        $region69: #{tpu_custom_call.1} parent=67 // pred_check
          %p1799 = pneg %p187
        $region70: #{tpu_custom_call.1} parent=67 // pred_check_branch
          %1801 = sbr.rel (%p1799) target = $region72
        $region71: #{tpu_custom_call.1} parent=67 // pred_region
          %s1802 = sand.u32 %s172, 1
          %s1803 = scalar_lea.sflag [#allocation4], %s1802
          %s1804 = sand.u32 %s172, 1
          %s1805 = smul.addr %s1804, 256
          %s1806 = scalar_lea.vmem [#allocation10], %s1805
          %1808 = dma.done %s1803, 4096
        $region72: #{tpu_custom_call.1} parent=67 // pred_fallthru
          _
      $region68: #{tpu_custom_call.1} parent=5 // pred_fallthru
        _
    $region6: #{tpu_custom_call.1} parent=1 // loop_footer
      %s26 = sadd.s32 1, %s22
    $region7: #{tpu_custom_call.1} parent=1 // loop_footer_branch
      %21 = sbr.rel target = $region3
    $region8: #{tpu_custom_call.1} parent=1 // loop_exit
      _
    %1809 = vsyncpa [#allocation3], 1
    %s1810 = scalar_lea.sflag [#allocation3], 1
    %1811 = vsyncpa %s1810, 1
    %1812 = vsyncpa [#allocation6], 1
    %s1813 = scalar_lea.sflag [#allocation6], 1
    %1814 = vsyncpa %s1813, 1
    %1815 = vsyncpa [#allocation9], 1
    %1816 = vsyncpa [#allocation4], 1
    %s1817 = scalar_lea.sflag [#allocation4], 1
    %1818 = vsyncpa %s1817, 1

</llo_original>
